<compile_context>
chip_gen: v7x
topology: tpu7x:2x2x1
jax: 0.10.0
libtpu: 0.0.40
codegen_flags: <defaults>
</compile_context>

<pallas_src>
import string
import numpy as np
import jax
import jax.numpy as jnp
from jax import lax
from jax.experimental import pallas as pl
from jax.experimental.pallas import tpu as pltpu


# ----------------------------- vocab (host-side glue, no torch) ----------------
class SimpleVocab:
    def __init__(self):
        self.word2id = {'<UNK>': 0, '<AND>': 1, '<BOS>': 2, '<EOS>': 3}
        self.wordcount = {k: 9e9 for k in self.word2id}

    def tokenize_text(self, text):
        text = text.encode('ascii', 'ignore').decode('ascii')
        trans = str.maketrans({key: None for key in string.punctuation})
        return str(text).lower().translate(trans).strip().split()

    def add_text_to_vocab(self, text):
        for token in self.tokenize_text(text):
            if token not in self.word2id:
                self.word2id[token] = len(self.word2id)
                self.wordcount[token] = 0
            self.wordcount[token] += 1

    def encode_text(self, text):
        return [self.word2id.get(t, 0) for t in self.tokenize_text(text)]

    def get_size(self):
        return len(self.word2id)


def _round_up(x, m):
    return ((x + m - 1) // m) * m


# ----------------------------- fused Pallas kernel ------------------------------
def lstm_block_kernel(x_ref, idx_ref, w_ih_ref, w_hh_ref, b_g_ref,
                      w_fc_ref, b_fc_ref, out_ref, feat_ref,
                      h_sc, c_sc, last_sc, xproj_sc):
    """One (batch-block, time-block) tile.

    grid = (num_batch_blocks, num_time_blocks); time is the inner, sequential
    ("arbitrary") axis.  h/c/last live in VMEM scratch, persist across time blocks
    and are re-initialised when a new batch block starts.
    """
    t_blk = pl.program_id(1)
    TT, BB, E = x_ref.shape
    Hp = h_sc.shape[-1]

    @pl.when(t_blk == 0)
    def _init():
        h_sc[...] = jnp.zeros_like(h_sc)
        c_sc[...] = jnp.zeros_like(c_sc)
        last_sc[...] = jnp.zeros_like(last_sc)

    # Hoisted input projection for the whole time block: one large-M MXU matmul
    # (off the recurrence critical path); bias added once in f32.
    x2d = x_ref[...].reshape(TT * BB, E).astype(w_ih_ref.dtype)
    gx = jnp.dot(x2d, w_ih_ref[...], preferred_element_type=jnp.float32)
    xproj_sc[...] = (gx + b_g_ref[...]).reshape(TT, BB, 4 * Hp)

    w_hh = w_hh_ref[...]                 # (Hp, 4*Hp) bf16, stays resident
    last_idx = idx_ref[...]              # (BB, 1) int32: last real timestep per row
    t0 = t_blk * TT

    def step(s, carry):
        # Recurrence critical path: single K=Hp matmul + gate math.
        gh = jnp.dot(h_sc[...].astype(w_hh.dtype), w_hh,
                     preferred_element_type=jnp.float32)
        gates = xproj_sc[s] + gh                          # (BB, 4*Hp) f32
        sg = jax.nn.sigmoid(gates[:, :3 * Hp])            # gate order: i, f, o, g
        i_g = sg[:, 0 * Hp:1 * Hp]
        f_g = sg[:, 1 * Hp:2 * Hp]
        o_g = sg[:, 2 * Hp:3 * Hp]
        g_g = jnp.tanh(gates[:, 3 * Hp:4 * Hp])
        c_new = f_g * c_sc[...] + i_g * g_g
        h_new = o_g * jnp.tanh(c_new)
        c_sc[...] = c_new
        h_sc[...] = h_new
        out_ref[s] = h_new.astype(out_ref.dtype)          # dense (BB, Hp) store
        # fused last-timestep gather: keep h where t == length-1
        last_sc[...] = jnp.where(last_idx == (t0 + s), h_new, last_sc[...])
        return carry

    if TT <= 16:                       # short blocks: full trace-time unroll
        for s in range(TT):
            step(s, 0)
    else:                              # long blocks: bound code size / live ranges
        lax.fori_loop(0, TT, step, 0, unroll=8)

    # Fused last-timestep FC head on the final time block.
    # TODO(synk): Dropout(p=0.1) before the Linear is identity in eval mode; the
    # training-time dropout mask is not implemented here.
    @pl.when(t_blk == pl.num_programs(1) - 1)
    def _head():
        feat_ref[...] = (jnp.dot(last_sc[...].astype(w_fc_ref.dtype), w_fc_ref[...],
                                 preferred_element_type=jnp.float32)
                         + b_fc_ref[...]).astype(feat_ref.dtype)


def lstm_fused_forward(etexts, last_idx, w_ih_p, w_hh_p, b_g_p, w_fc_p, b_fc_p,
                       *, TT, BB):
    """etexts: (Tp, Bp, E) f32 -> (time-major lstm_out (Tp, Bp, Hp), feats (Bp, Hp))."""
    Tp, Bp, E = etexts.shape
    Hp = w_fc_p.shape[0]
    H4 = w_hh_p.shape[1]
    NB, NT = Bp // BB, Tp // TT

    # NOTE: the constant weight specs (w_ih/w_hh/b_g/w_fc/b_fc) could additionally be
    # single-buffered (pipeline_mode=pl.Buffered(1)) when H/E are scaled up on v7x;
    # at these sizes double-buffered constants are negligible.
    return pl.pallas_call(
        lstm_block_kernel,
        out_shape=(jax.ShapeDtypeStruct((Tp, Bp, Hp), jnp.float32),
                   jax.ShapeDtypeStruct((Bp, Hp), jnp.float32)),
        grid_spec=pltpu.PrefetchScalarGridSpec(
            num_scalar_prefetch=0,
            grid=(NB, NT),
            in_specs=[
                pl.BlockSpec((TT, BB, E), lambda b, t: (t, b, 0)),   # embedded tokens
                pl.BlockSpec((BB, 1),     lambda b, t: (b, 0)),      # last-step indices
                pl.BlockSpec((E, H4),     lambda b, t: (0, 0)),      # W_ih^T (bf16)
                pl.BlockSpec((Hp, H4),    lambda b, t: (0, 0)),      # W_hh^T (bf16)
                pl.BlockSpec((1, H4),     lambda b, t: (0, 0)),      # gate bias (f32)
                pl.BlockSpec((Hp, Hp),    lambda b, t: (0, 0)),      # FC weight (bf16)
                pl.BlockSpec((1, Hp),     lambda b, t: (0, 0)),      # FC bias (f32)
            ],
            out_specs=[
                pl.BlockSpec((TT, BB, Hp), lambda b, t: (t, b, 0)),  # time-major output
                pl.BlockSpec((BB, Hp),     lambda b, t: (b, 0)),     # text features
            ],
            scratch_shapes=[
                pltpu.VMEM((BB, Hp), jnp.float32),        # h state
                pltpu.VMEM((BB, Hp), jnp.float32),        # c state
                pltpu.VMEM((BB, Hp), jnp.float32),        # h at last real timestep
                pltpu.VMEM((TT, BB, H4), jnp.float32),    # hoisted x-projection
            ],
        ),
        compiler_params=pltpu.CompilerParams(
            # batch blocks independent (megacore-shardable on v7x); time is the recurrence.
            dimension_semantics=("parallel", "arbitrary")),
    )(etexts, last_idx, w_ih_p, w_hh_p, b_g_p, w_fc_p, b_fc_p)


# ----------------------------- parameter packing --------------------------------
def build_kernel_params(params, E, H, Hp):
    """Pack PyTorch-layout parameters into lane-aligned kernel tensors.

    * w_ih_p (E, 4*Hp) bf16 and w_hh_p (Hp, 4*Hp) bf16, gate order i, f, o, g
      (sigmoid gates contiguous); each gate occupies its own 128-lane block.
    * b_g_p (1, 4*Hp) f32 = b_ih + b_hh (added once to the hoisted x-projection).
    * FC weight stored transposed (x @ W^T), bf16, zero-padded to (Hp, Hp).
    """
    emb  = np.asarray(params['emb'],  np.float32)            # (V, E)
    w_ih = np.asarray(params['w_ih'], np.float32)             # (4H, E), torch order i,f,g,o
    w_hh = np.asarray(params['w_hh'], np.float32)             # (4H, H)
    bias = np.asarray(params['b_ih'], np.float32) + np.asarray(params['b_hh'], np.float32)
    w_fc = np.asarray(params['w_fc'], np.float32)              # (H, H)
    b_fc = np.asarray(params['b_fc'], np.float32)              # (H,)

    perm = [0, 1, 3, 2]     # kernel slots [i, f, o, g] <- torch gate blocks [i, f, g, o]
    w_ih_p = np.zeros((E, 4 * Hp), np.float32)
    w_hh_p = np.zeros((Hp, 4 * Hp), np.float32)
    b_g_p  = np.zeros((1, 4 * Hp), np.float32)
    for slot, g in enumerate(perm):
        w_ih_p[:,  slot * Hp:slot * Hp + H] = w_ih[g * H:(g + 1) * H, :].T
        w_hh_p[:H, slot * Hp:slot * Hp + H] = w_hh[g * H:(g + 1) * H, :].T
        b_g_p[0,   slot * Hp:slot * Hp + H] = bias[g * H:(g + 1) * H]

    w_fc_p = np.zeros((Hp, Hp), np.float32)
    w_fc_p[:H, :H] = w_fc.T
    b_fc_p = np.zeros((1, Hp), np.float32)
    b_fc_p[0, :H] = b_fc

    return (jnp.asarray(emb),                               # f32 gather table (unpadded E)
            jnp.asarray(w_ih_p, jnp.bfloat16),
            jnp.asarray(w_hh_p, jnp.bfloat16),
            jnp.asarray(b_g_p,  jnp.float32),
            jnp.asarray(w_fc_p, jnp.bfloat16),
            jnp.asarray(b_fc_p, jnp.float32))


def _choose_tiling(T, B):
    """Pick (TT, Tp, BB, Bp): whole sequence per block when short, BB toward 128."""
    BB = min(128, _round_up(B, 8))
    Bp = _round_up(B, BB)
    Tp = _round_up(T, 8)
    if Tp <= 32:
        TT = Tp                                   # NT = 1 for short sequences
    else:
        TT = 32 if Tp % 32 == 0 else (16 if Tp % 16 == 0 else 8)
    return TT, Tp, BB, Bp


# ----------------------------- full model forward -------------------------------
def text_lstm_forward(itexts, lengths, kernel_params, H):
    """itexts: (T, B) int32 padded token ids (time-major, like the torch module).
    Returns (lstm_output (B, T, H), text_features (B, H))."""
    emb, w_ih_p, w_hh_p, b_g_p, w_fc_p, b_fc_p = kernel_params
    T, B = itexts.shape
    Hp = w_fc_p.shape[0]
    TT, Tp, BB, Bp = _choose_tiling(T, B)

    itexts_p = jnp.zeros((Tp, Bp), jnp.int32).at[:T, :B].set(itexts)
    # TODO(synk): the embedding gather could move in-kernel (scalar-prefetched token
    # ids + row DMA); kept as an XLA gather on the unpadded (V, E) table for now.
    etexts = jnp.take(emb, itexts_p, axis=0)                   # (Tp, Bp, E) f32

    # index of last real timestep (length-1; wrap like torch's -1 for empty texts)
    last_idx = jnp.where(lengths > 0, lengths - 1, T - 1).astype(jnp.int32)
    last_idx_p = jnp.zeros((Bp, 1), jnp.int32).at[:B, 0].set(last_idx)

    out_tm, feats_p = lstm_fused_forward(etexts, last_idx_p, w_ih_p, w_hh_p, b_g_p,
                                         w_fc_p, b_fc_p, TT=TT, BB=BB)
    lstm_out = jnp.transpose(out_tm, (1, 0, 2))[:B, :T, :H]    # torch .permute(1,0,2)
    return lstm_out, feats_p[:B, :H]


# ----------------------------- pure-JAX reference (correctness) -----------------
def reference_forward(itexts, lengths, params, H):
    T, B = itexts.shape
    etexts = jnp.take(params['emb'], itexts, axis=0)           # (T, B, E)
    w_ih, w_hh = params['w_ih'], params['w_hh']
    bias = params['b_ih'] + params['b_hh']

    def step(carry, x_t):
        h, c = carry
        gates = x_t @ w_ih.T + h @ w_hh.T + bias
        i = jax.nn.sigmoid(gates[:, 0 * H:1 * H])
        f = jax.nn.sigmoid(gates[:, 1 * H:2 * H])
        g = jnp.tanh(gates[:, 2 * H:3 * H])
        o = jax.nn.sigmoid(gates[:, 3 * H:4 * H])
        c = f * c + i * g
        h = o * jnp.tanh(c)
        return (h, c), h

    init = (jnp.zeros((B, H), jnp.float32), jnp.zeros((B, H), jnp.float32))
    _, hs = lax.scan(step, init, etexts)                       # (T, B, H)
    last_idx = jnp.where(lengths > 0, lengths - 1, T - 1)
    last_h = hs[last_idx, jnp.arange(B), :]
    feats = last_h @ params['w_fc'].T + params['b_fc']
    return jnp.transpose(hs, (1, 0, 2)), feats


# ----------------------------- main ----------------------------------------------
if __name__ == "__main__":
    word_embed_dim = 32      # small logical dims; kernel pads H to 128 lanes internally
    lstm_hidden_dim = 32

    texts = ["a red dress with flowers",
             "blue shirt and black pants please"]

    vocab = SimpleVocab()
    for t in texts:
        vocab.add_text_to_vocab(t)
    encoded = [vocab.encode_text(t) for t in texts]
    lengths_np = np.array([len(e) for e in encoded], dtype=np.int32)
    T, B = int(lengths_np.max()), len(encoded)
    itexts_np = np.zeros((T, B), dtype=np.int32)
    for i, e in enumerate(encoded):
        itexts_np[:len(e), i] = np.array(e, dtype=np.int32)

    vocab_size = vocab.get_size()
    E, H = word_embed_dim, lstm_hidden_dim
    Hp = _round_up(H, 128)

    # deterministic PyTorch-layout parameters
    key = jax.random.PRNGKey(0)
    k_emb, k_wih, k_whh, k_bih, k_bhh, k_wfc, k_bfc = jax.random.split(key, 7)
    scale = 1.0 / np.sqrt(H)
    params = {
        'emb':  jax.random.normal(k_emb, (vocab_size, E), jnp.float32),
        'w_ih': jax.random.uniform(k_wih, (4 * H, E), jnp.float32, -scale, scale),
        'w_hh': jax.random.uniform(k_whh, (4 * H, H), jnp.float32, -scale, scale),
        'b_ih': jax.random.uniform(k_bih, (4 * H,), jnp.float32, -scale, scale),
        'b_hh': jax.random.uniform(k_bhh, (4 * H,), jnp.float32, -scale, scale),
        'w_fc': jax.random.uniform(k_wfc, (H, H), jnp.float32, -scale, scale),
        'b_fc': jax.random.uniform(k_bfc, (H,), jnp.float32, -scale, scale),
    }
    kernel_params = build_kernel_params(params, E, H, Hp)

    itexts = jnp.asarray(itexts_np)
    lengths = jnp.asarray(lengths_np)

    lstm_output, text_features = text_lstm_forward(itexts, lengths, kernel_params, H)
    jax.block_until_ready((lstm_output, text_features))

    assert lstm_output.shape == (B, T, H)
    assert text_features.shape == (B, H)

    # correctness check against a pure-JAX f32 reference LSTM
    # (tolerance widened for bf16 MXU inputs with f32 accumulation)
    ref_out, ref_feats = reference_forward(itexts, lengths, params, H)
    np.testing.assert_allclose(np.asarray(lstm_output), np.asarray(ref_out),
                               rtol=2e-2, atol=2e-2)
    np.testing.assert_allclose(np.asarray(text_features), np.asarray(ref_feats),
                               rtol=2e-2, atol=2e-2)

    print("KERNEL_OK")
</pallas_src>

<mosaic_0001>
module attributes {stable_mosaic.version = 11 : i64} {
  func.func @lstm_block_kernel(%arg0: i32, %arg1: i32, %arg2: memref<8x8x32xf32, #tpu.memory_space<vmem>>, %arg3: memref<8x1xi32, #tpu.memory_space<vmem>>, %arg4: memref<32x512xbf16, #tpu.memory_space<vmem>>, %arg5: memref<128x512xbf16, #tpu.memory_space<vmem>>, %arg6: memref<1x512xf32, #tpu.memory_space<vmem>>, %arg7: memref<128x128xbf16, #tpu.memory_space<vmem>>, %arg8: memref<1x128xf32, #tpu.memory_space<vmem>>, %arg9: memref<8x8x128xf32, #tpu.memory_space<vmem>>, %arg10: memref<8x128xf32, #tpu.memory_space<vmem>>, %arg11: memref<8x128xf32, #tpu.memory_space<vmem>>, %arg12: memref<8x128xf32, #tpu.memory_space<vmem>>, %arg13: memref<8x128xf32, #tpu.memory_space<vmem>>, %arg14: memref<8x8x512xf32, #tpu.memory_space<vmem>>) attributes {dimension_semantics = [#tpu.dimension_semantics<parallel>, #tpu.dimension_semantics<arbitrary>], iteration_bounds = array<i64: 1, 1>, scalar_prefetch = 0 : i64, scratch_operands = 4 : i64, tpu.core_type = #tpu.core_type<tc>, window_params = [{transform_indices = @transform_0, window_bounds = array<i64: 8, 8, 32>}, {transform_indices = @transform_1, window_bounds = array<i64: 8, 1>}, {pipeline_mode = #tpu.pipeline_mode<synchronous>, transform_indices = @transform_2, window_bounds = array<i64: 32, 512>}, {pipeline_mode = #tpu.pipeline_mode<synchronous>, transform_indices = @transform_3, window_bounds = array<i64: 128, 512>}, {pipeline_mode = #tpu.pipeline_mode<synchronous>, transform_indices = @transform_4, window_bounds = array<i64: 1, 512>}, {pipeline_mode = #tpu.pipeline_mode<synchronous>, transform_indices = @transform_5, window_bounds = array<i64: 128, 128>}, {pipeline_mode = #tpu.pipeline_mode<synchronous>, transform_indices = @transform_6, window_bounds = array<i64: 1, 128>}, {transform_indices = @transform_7, window_bounds = array<i64: 8, 8, 128>}, {transform_indices = @transform_8, window_bounds = array<i64: 8, 128>}]} {
    %c0_i32 = arith.constant 0 : i32
    %0 = arith.cmpi eq, %arg1, %c0_i32 : i32
    %1 = arith.extui %0 : i1 to i32
    %c0_i32_0 = arith.constant 0 : i32
    %2 = arith.cmpi ne, %1, %c0_i32_0 : i32
    scf.if %2 {
      %cst_170 = arith.constant 0.000000e+00 : f32
      %307 = vector.broadcast %cst_170 : f32 to vector<8x128xf32>
      %c0_171 = arith.constant 0 : index
      %c0_172 = arith.constant 0 : index
      %308 = vector.load %arg11[%c0_171, %c0_172] : memref<8x128xf32, #tpu.memory_space<vmem>>, vector<8x128xf32>
      tpu.vector_store %arg11[%c0_171, %c0_172], %307 {strides = array<i32>} : memref<8x128xf32, #tpu.memory_space<vmem>>, vector<8x128xf32>,
      %cst_173 = arith.constant 0.000000e+00 : f32
      %309 = vector.broadcast %cst_173 : f32 to vector<8x128xf32>
      %c0_174 = arith.constant 0 : index
      %c0_175 = arith.constant 0 : index
      %310 = vector.load %arg12[%c0_174, %c0_175] : memref<8x128xf32, #tpu.memory_space<vmem>>, vector<8x128xf32>
      tpu.vector_store %arg12[%c0_174, %c0_175], %309 {strides = array<i32>} : memref<8x128xf32, #tpu.memory_space<vmem>>, vector<8x128xf32>,
      %cst_176 = arith.constant 0.000000e+00 : f32
      %311 = vector.broadcast %cst_176 : f32 to vector<8x128xf32>
      %c0_177 = arith.constant 0 : index
      %c0_178 = arith.constant 0 : index
      %312 = vector.load %arg13[%c0_177, %c0_178] : memref<8x128xf32, #tpu.memory_space<vmem>>, vector<8x128xf32>
      tpu.vector_store %arg13[%c0_177, %c0_178], %311 {strides = array<i32>} : memref<8x128xf32, #tpu.memory_space<vmem>>, vector<8x128xf32>,
    } else {
    }
    %c0 = arith.constant 0 : index
    %c0_1 = arith.constant 0 : index
    %c0_2 = arith.constant 0 : index
    %3 = vector.load %arg2[%c0, %c0_1, %c0_2] : memref<8x8x32xf32, #tpu.memory_space<vmem>>, vector<8x8x32xf32>
    %4 = vector.shape_cast %3 : vector<8x8x32xf32> to vector<64x32xf32>
    %5 = arith.truncf %4 : vector<64x32xf32> to vector<64x32xbf16>
    %c0_3 = arith.constant 0 : index
    %c0_4 = arith.constant 0 : index
    %6 = vector.load %arg4[%c0_3, %c0_4] : memref<32x512xbf16, #tpu.memory_space<vmem>>, vector<32x512xbf16>
    %cst = arith.constant dense<0.000000e+00> : vector<64x512xf32>
    %7 = tpu.matmul %5, %6, %cst {dimension_numbers = #tpu.dot_dimension_numbers<[1], [0], [0], [1], [0, 0, 1, 1], [], []>} : vector<64x32xbf16>, vector<32x512xbf16>, vector<64x512xf32> -> vector<64x512xf32>
    %c0_5 = arith.constant 0 : index
    %c0_6 = arith.constant 0 : index
    %8 = vector.load %arg6[%c0_5, %c0_6] : memref<1x512xf32, #tpu.memory_space<vmem>>, vector<1x512xf32>
    %9 = vector.broadcast %8 : vector<1x512xf32> to vector<64x512xf32>
    %10 = arith.addf %7, %9 : vector<64x512xf32>
    %11 = vector.shape_cast %10 : vector<64x512xf32> to vector<8x8x512xf32>
    %c0_7 = arith.constant 0 : index
    %c0_8 = arith.constant 0 : index
    %c0_9 = arith.constant 0 : index
    %12 = vector.load %arg14[%c0_7, %c0_8, %c0_9] : memref<8x8x512xf32, #tpu.memory_space<vmem>>, vector<8x8x512xf32>
    tpu.vector_store %arg14[%c0_7, %c0_8, %c0_9], %11 {strides = array<i32>} : memref<8x8x512xf32, #tpu.memory_space<vmem>>, vector<8x8x512xf32>,
    %c0_10 = arith.constant 0 : index
    %c0_11 = arith.constant 0 : index
    %13 = vector.load %arg5[%c0_10, %c0_11] : memref<128x512xbf16, #tpu.memory_space<vmem>>, vector<128x512xbf16>
    %c0_12 = arith.constant 0 : index
    %c0_13 = arith.constant 0 : index
    %14 = vector.load %arg3[%c0_12, %c0_13] : memref<8x1xi32, #tpu.memory_space<vmem>>, vector<8x1xi32>
    %c8_i32 = arith.constant 8 : i32
    %15 = arith.muli %arg1, %c8_i32 : i32
    %c0_14 = arith.constant 0 : index
    %c0_15 = arith.constant 0 : index
    %16 = vector.load %arg11[%c0_14, %c0_15] : memref<8x128xf32, #tpu.memory_space<vmem>>, vector<8x128xf32>
    %17 = arith.truncf %16 : vector<8x128xf32> to vector<8x128xbf16>
    %cst_16 = arith.constant dense<0.000000e+00> : vector<8x512xf32>
    %18 = tpu.matmul %17, %13, %cst_16 {dimension_numbers = #tpu.dot_dimension_numbers<[1], [0], [0], [1], [0, 0, 1, 1], [], []>} : vector<8x128xbf16>, vector<128x512xbf16>, vector<8x512xf32> -> vector<8x512xf32>
    %c0_17 = arith.constant 0 : index
    %c0_18 = arith.constant 0 : index
    %c0_19 = arith.constant 0 : index
    %19 = vector.load %arg14[%c0_17, %c0_18, %c0_19] : memref<8x8x512xf32, #tpu.memory_space<vmem>>, vector<1x8x512xf32>
    %20 = vector.shape_cast %19 : vector<1x8x512xf32> to vector<8x512xf32>
    %21 = arith.addf %20, %18 : vector<8x512xf32>
    %22 = vector.extract_strided_slice %21 {offsets = [0, 0], sizes = [8, 384], strides = [1, 1]} : vector<8x512xf32> to vector<8x384xf32>
    %23 = arith.negf %22 : vector<8x384xf32>
    %24 = math.exp %23 : vector<8x384xf32>
    %cst_20 = arith.constant 1.000000e+00 : f32
    %25 = vector.broadcast %cst_20 : f32 to vector<8x384xf32>
    %26 = arith.addf %25, %24 : vector<8x384xf32>
    %27 = arith.divf %25, %26 : vector<8x384xf32>
    %28 = vector.extract_strided_slice %27 {offsets = [0, 0], sizes = [8, 128], strides = [1, 1]} : vector<8x384xf32> to vector<8x128xf32>
    %29 = vector.extract_strided_slice %27 {offsets = [0, 128], sizes = [8, 128], strides = [1, 1]} : vector<8x384xf32> to vector<8x128xf32>
    %30 = vector.extract_strided_slice %27 {offsets = [0, 256], sizes = [8, 128], strides = [1, 1]} : vector<8x384xf32> to vector<8x128xf32>
    %31 = vector.extract_strided_slice %21 {offsets = [0, 384], sizes = [8, 128], strides = [1, 1]} : vector<8x512xf32> to vector<8x128xf32>
    %32 = math.tanh %31 : vector<8x128xf32>
    %c0_21 = arith.constant 0 : index
    %c0_22 = arith.constant 0 : index
    %33 = vector.load %arg12[%c0_21, %c0_22] : memref<8x128xf32, #tpu.memory_space<vmem>>, vector<8x128xf32>
    %34 = arith.mulf %29, %33 : vector<8x128xf32>
    %35 = arith.mulf %28, %32 : vector<8x128xf32>
    %36 = arith.addf %34, %35 : vector<8x128xf32>
    %37 = math.tanh %36 : vector<8x128xf32>
    %38 = arith.mulf %30, %37 : vector<8x128xf32>
    %c0_23 = arith.constant 0 : index
    %c0_24 = arith.constant 0 : index
    %39 = vector.load %arg12[%c0_23, %c0_24] : memref<8x128xf32, #tpu.memory_space<vmem>>, vector<8x128xf32>
    tpu.vector_store %arg12[%c0_23, %c0_24], %36 {strides = array<i32>} : memref<8x128xf32, #tpu.memory_space<vmem>>, vector<8x128xf32>,
    %c0_25 = arith.constant 0 : index
    %c0_26 = arith.constant 0 : index
    %40 = vector.load %arg11[%c0_25, %c0_26] : memref<8x128xf32, #tpu.memory_space<vmem>>, vector<8x128xf32>
    tpu.vector_store %arg11[%c0_25, %c0_26], %38 {strides = array<i32>} : memref<8x128xf32, #tpu.memory_space<vmem>>, vector<8x128xf32>,
    %c0_27 = arith.constant 0 : index
    %c0_28 = arith.constant 0 : index
    %c0_29 = arith.constant 0 : index
    %41 = vector.load %arg9[%c0_27, %c0_28, %c0_29] : memref<8x8x128xf32, #tpu.memory_space<vmem>>, vector<1x8x128xf32>
    %42 = vector.shape_cast %41 : vector<1x8x128xf32> to vector<8x128xf32>
    %43 = vector.shape_cast %38 : vector<8x128xf32> to vector<1x8x128xf32>
    tpu.vector_store %arg9[%c0_27, %c0_28, %c0_29], %43 {strides = array<i32>} : memref<8x8x128xf32, #tpu.memory_space<vmem>>, vector<1x8x128xf32>,
    %c0_i32_30 = arith.constant 0 : i32
    %44 = arith.addi %15, %c0_i32_30 : i32
    %45 = vector.broadcast %44 : i32 to vector<8x1xi32>
    %46 = arith.cmpi eq, %14, %45 : vector<8x1xi32>
    %c0_31 = arith.constant 0 : index
    %c0_32 = arith.constant 0 : index
    %47 = vector.load %arg13[%c0_31, %c0_32] : memref<8x128xf32, #tpu.memory_space<vmem>>, vector<8x128xf32>
    %48 = vector.shape_cast %46 : vector<8x1xi1> to vector<8x1xi1>
    %49 = vector.broadcast %48 : vector<8x1xi1> to vector<8x128xi1>
    %50 = arith.select %49, %38, %47 : vector<8x128xi1>, vector<8x128xf32>
    %c0_33 = arith.constant 0 : index
    %c0_34 = arith.constant 0 : index
    %51 = vector.load %arg13[%c0_33, %c0_34] : memref<8x128xf32, #tpu.memory_space<vmem>>, vector<8x128xf32>
    tpu.vector_store %arg13[%c0_33, %c0_34], %50 {strides = array<i32>} : memref<8x128xf32, #tpu.memory_space<vmem>>, vector<8x128xf32>,
    %c0_35 = arith.constant 0 : index
    %c0_36 = arith.constant 0 : index
    %52 = vector.load %arg11[%c0_35, %c0_36] : memref<8x128xf32, #tpu.memory_space<vmem>>, vector<8x128xf32>
    %53 = arith.truncf %52 : vector<8x128xf32> to vector<8x128xbf16>
    %cst_37 = arith.constant dense<0.000000e+00> : vector<8x512xf32>
    %54 = tpu.matmul %53, %13, %cst_37 {dimension_numbers = #tpu.dot_dimension_numbers<[1], [0], [0], [1], [0, 0, 1, 1], [], []>} : vector<8x128xbf16>, vector<128x512xbf16>, vector<8x512xf32> -> vector<8x512xf32>
    %c1 = arith.constant 1 : index
    %c0_38 = arith.constant 0 : index
    %c0_39 = arith.constant 0 : index
    %55 = vector.load %arg14[%c1, %c0_38, %c0_39] : memref<8x8x512xf32, #tpu.memory_space<vmem>>, vector<1x8x512xf32>
    %56 = vector.shape_cast %55 : vector<1x8x512xf32> to vector<8x512xf32>
    %57 = arith.addf %56, %54 : vector<8x512xf32>
    %58 = vector.extract_strided_slice %57 {offsets = [0, 0], sizes = [8, 384], strides = [1, 1]} : vector<8x512xf32> to vector<8x384xf32>
    %59 = arith.negf %58 : vector<8x384xf32>
    %60 = math.exp %59 : vector<8x384xf32>
    %cst_40 = arith.constant 1.000000e+00 : f32
    %61 = vector.broadcast %cst_40 : f32 to vector<8x384xf32>
    %62 = arith.addf %61, %60 : vector<8x384xf32>
    %63 = arith.divf %61, %62 : vector<8x384xf32>
    %64 = vector.extract_strided_slice %63 {offsets = [0, 0], sizes = [8, 128], strides = [1, 1]} : vector<8x384xf32> to vector<8x128xf32>
    %65 = vector.extract_strided_slice %63 {offsets = [0, 128], sizes = [8, 128], strides = [1, 1]} : vector<8x384xf32> to vector<8x128xf32>
    %66 = vector.extract_strided_slice %63 {offsets = [0, 256], sizes = [8, 128], strides = [1, 1]} : vector<8x384xf32> to vector<8x128xf32>
    %67 = vector.extract_strided_slice %57 {offsets = [0, 384], sizes = [8, 128], strides = [1, 1]} : vector<8x512xf32> to vector<8x128xf32>
    %68 = math.tanh %67 : vector<8x128xf32>
    %c0_41 = arith.constant 0 : index
    %c0_42 = arith.constant 0 : index
    %69 = vector.load %arg12[%c0_41, %c0_42] : memref<8x128xf32, #tpu.memory_space<vmem>>, vector<8x128xf32>
    %70 = arith.mulf %65, %69 : vector<8x128xf32>
    %71 = arith.mulf %64, %68 : vector<8x128xf32>
    %72 = arith.addf %70, %71 : vector<8x128xf32>
    %73 = math.tanh %72 : vector<8x128xf32>
    %74 = arith.mulf %66, %73 : vector<8x128xf32>
    %c0_43 = arith.constant 0 : index
    %c0_44 = arith.constant 0 : index
    %75 = vector.load %arg12[%c0_43, %c0_44] : memref<8x128xf32, #tpu.memory_space<vmem>>, vector<8x128xf32>
    tpu.vector_store %arg12[%c0_43, %c0_44], %72 {strides = array<i32>} : memref<8x128xf32, #tpu.memory_space<vmem>>, vector<8x128xf32>,
    %c0_45 = arith.constant 0 : index
    %c0_46 = arith.constant 0 : index
    %76 = vector.load %arg11[%c0_45, %c0_46] : memref<8x128xf32, #tpu.memory_space<vmem>>, vector<8x128xf32>
    tpu.vector_store %arg11[%c0_45, %c0_46], %74 {strides = array<i32>} : memref<8x128xf32, #tpu.memory_space<vmem>>, vector<8x128xf32>,
    %c1_47 = arith.constant 1 : index
    %c0_48 = arith.constant 0 : index
    %c0_49 = arith.constant 0 : index
    %77 = vector.load %arg9[%c1_47, %c0_48, %c0_49] : memref<8x8x128xf32, #tpu.memory_space<vmem>>, vector<1x8x128xf32>
    %78 = vector.shape_cast %77 : vector<1x8x128xf32> to vector<8x128xf32>
    %79 = vector.shape_cast %74 : vector<8x128xf32> to vector<1x8x128xf32>
    tpu.vector_store %arg9[%c1_47, %c0_48, %c0_49], %79 {strides = array<i32>} : memref<8x8x128xf32, #tpu.memory_space<vmem>>, vector<1x8x128xf32>,
    %c1_i32 = arith.constant 1 : i32
    %80 = arith.addi %15, %c1_i32 : i32
    %81 = vector.broadcast %80 : i32 to vector<8x1xi32>
    %82 = arith.cmpi eq, %14, %81 : vector<8x1xi32>
    %c0_50 = arith.constant 0 : index
    %c0_51 = arith.constant 0 : index
    %83 = vector.load %arg13[%c0_50, %c0_51] : memref<8x128xf32, #tpu.memory_space<vmem>>, vector<8x128xf32>
    %84 = vector.shape_cast %82 : vector<8x1xi1> to vector<8x1xi1>
    %85 = vector.broadcast %84 : vector<8x1xi1> to vector<8x128xi1>
    %86 = arith.select %85, %74, %83 : vector<8x128xi1>, vector<8x128xf32>
    %c0_52 = arith.constant 0 : index
    %c0_53 = arith.constant 0 : index
    %87 = vector.load %arg13[%c0_52, %c0_53] : memref<8x128xf32, #tpu.memory_space<vmem>>, vector<8x128xf32>
    tpu.vector_store %arg13[%c0_52, %c0_53], %86 {strides = array<i32>} : memref<8x128xf32, #tpu.memory_space<vmem>>, vector<8x128xf32>,
    %c0_54 = arith.constant 0 : index
    %c0_55 = arith.constant 0 : index
    %88 = vector.load %arg11[%c0_54, %c0_55] : memref<8x128xf32, #tpu.memory_space<vmem>>, vector<8x128xf32>
    %89 = arith.truncf %88 : vector<8x128xf32> to vector<8x128xbf16>
    %cst_56 = arith.constant dense<0.000000e+00> : vector<8x512xf32>
    %90 = tpu.matmul %89, %13, %cst_56 {dimension_numbers = #tpu.dot_dimension_numbers<[1], [0], [0], [1], [0, 0, 1, 1], [], []>} : vector<8x128xbf16>, vector<128x512xbf16>, vector<8x512xf32> -> vector<8x512xf32>
    %c2 = arith.constant 2 : index
    %c0_57 = arith.constant 0 : index
    %c0_58 = arith.constant 0 : index
    %91 = vector.load %arg14[%c2, %c0_57, %c0_58] : memref<8x8x512xf32, #tpu.memory_space<vmem>>, vector<1x8x512xf32>
    %92 = vector.shape_cast %91 : vector<1x8x512xf32> to vector<8x512xf32>
    %93 = arith.addf %92, %90 : vector<8x512xf32>
    %94 = vector.extract_strided_slice %93 {offsets = [0, 0], sizes = [8, 384], strides = [1, 1]} : vector<8x512xf32> to vector<8x384xf32>
    %95 = arith.negf %94 : vector<8x384xf32>
    %96 = math.exp %95 : vector<8x384xf32>
    %cst_59 = arith.constant 1.000000e+00 : f32
    %97 = vector.broadcast %cst_59 : f32 to vector<8x384xf32>
    %98 = arith.addf %97, %96 : vector<8x384xf32>
    %99 = arith.divf %97, %98 : vector<8x384xf32>
    %100 = vector.extract_strided_slice %99 {offsets = [0, 0], sizes = [8, 128], strides = [1, 1]} : vector<8x384xf32> to vector<8x128xf32>
    %101 = vector.extract_strided_slice %99 {offsets = [0, 128], sizes = [8, 128], strides = [1, 1]} : vector<8x384xf32> to vector<8x128xf32>
    %102 = vector.extract_strided_slice %99 {offsets = [0, 256], sizes = [8, 128], strides = [1, 1]} : vector<8x384xf32> to vector<8x128xf32>
    %103 = vector.extract_strided_slice %93 {offsets = [0, 384], sizes = [8, 128], strides = [1, 1]} : vector<8x512xf32> to vector<8x128xf32>
    %104 = math.tanh %103 : vector<8x128xf32>
    %c0_60 = arith.constant 0 : index
    %c0_61 = arith.constant 0 : index
    %105 = vector.load %arg12[%c0_60, %c0_61] : memref<8x128xf32, #tpu.memory_space<vmem>>, vector<8x128xf32>
    %106 = arith.mulf %101, %105 : vector<8x128xf32>
    %107 = arith.mulf %100, %104 : vector<8x128xf32>
    %108 = arith.addf %106, %107 : vector<8x128xf32>
    %109 = math.tanh %108 : vector<8x128xf32>
    %110 = arith.mulf %102, %109 : vector<8x128xf32>
    %c0_62 = arith.constant 0 : index
    %c0_63 = arith.constant 0 : index
    %111 = vector.load %arg12[%c0_62, %c0_63] : memref<8x128xf32, #tpu.memory_space<vmem>>, vector<8x128xf32>
    tpu.vector_store %arg12[%c0_62, %c0_63], %108 {strides = array<i32>} : memref<8x128xf32, #tpu.memory_space<vmem>>, vector<8x128xf32>,
    %c0_64 = arith.constant 0 : index
    %c0_65 = arith.constant 0 : index
    %112 = vector.load %arg11[%c0_64, %c0_65] : memref<8x128xf32, #tpu.memory_space<vmem>>, vector<8x128xf32>
    tpu.vector_store %arg11[%c0_64, %c0_65], %110 {strides = array<i32>} : memref<8x128xf32, #tpu.memory_space<vmem>>, vector<8x128xf32>,
    %c2_66 = arith.constant 2 : index
    %c0_67 = arith.constant 0 : index
    %c0_68 = arith.constant 0 : index
    %113 = vector.load %arg9[%c2_66, %c0_67, %c0_68] : memref<8x8x128xf32, #tpu.memory_space<vmem>>, vector<1x8x128xf32>
    %114 = vector.shape_cast %113 : vector<1x8x128xf32> to vector<8x128xf32>
    %115 = vector.shape_cast %110 : vector<8x128xf32> to vector<1x8x128xf32>
    tpu.vector_store %arg9[%c2_66, %c0_67, %c0_68], %115 {strides = array<i32>} : memref<8x8x128xf32, #tpu.memory_space<vmem>>, vector<1x8x128xf32>,
    %c2_i32 = arith.constant 2 : i32
    %116 = arith.addi %15, %c2_i32 : i32
    %117 = vector.broadcast %116 : i32 to vector<8x1xi32>
    %118 = arith.cmpi eq, %14, %117 : vector<8x1xi32>
    %c0_69 = arith.constant 0 : index
    %c0_70 = arith.constant 0 : index
    %119 = vector.load %arg13[%c0_69, %c0_70] : memref<8x128xf32, #tpu.memory_space<vmem>>, vector<8x128xf32>
    %120 = vector.shape_cast %118 : vector<8x1xi1> to vector<8x1xi1>
    %121 = vector.broadcast %120 : vector<8x1xi1> to vector<8x128xi1>
    %122 = arith.select %121, %110, %119 : vector<8x128xi1>, vector<8x128xf32>
    %c0_71 = arith.constant 0 : index
    %c0_72 = arith.constant 0 : index
    %123 = vector.load %arg13[%c0_71, %c0_72] : memref<8x128xf32, #tpu.memory_space<vmem>>, vector<8x128xf32>
    tpu.vector_store %arg13[%c0_71, %c0_72], %122 {strides = array<i32>} : memref<8x128xf32, #tpu.memory_space<vmem>>, vector<8x128xf32>,
    %c0_73 = arith.constant 0 : index
    %c0_74 = arith.constant 0 : index
    %124 = vector.load %arg11[%c0_73, %c0_74] : memref<8x128xf32, #tpu.memory_space<vmem>>, vector<8x128xf32>
    %125 = arith.truncf %124 : vector<8x128xf32> to vector<8x128xbf16>
    %cst_75 = arith.constant dense<0.000000e+00> : vector<8x512xf32>
    %126 = tpu.matmul %125, %13, %cst_75 {dimension_numbers = #tpu.dot_dimension_numbers<[1], [0], [0], [1], [0, 0, 1, 1], [], []>} : vector<8x128xbf16>, vector<128x512xbf16>, vector<8x512xf32> -> vector<8x512xf32>
    %c3 = arith.constant 3 : index
    %c0_76 = arith.constant 0 : index
    %c0_77 = arith.constant 0 : index
    %127 = vector.load %arg14[%c3, %c0_76, %c0_77] : memref<8x8x512xf32, #tpu.memory_space<vmem>>, vector<1x8x512xf32>
    %128 = vector.shape_cast %127 : vector<1x8x512xf32> to vector<8x512xf32>
    %129 = arith.addf %128, %126 : vector<8x512xf32>
    %130 = vector.extract_strided_slice %129 {offsets = [0, 0], sizes = [8, 384], strides = [1, 1]} : vector<8x512xf32> to vector<8x384xf32>
    %131 = arith.negf %130 : vector<8x384xf32>
    %132 = math.exp %131 : vector<8x384xf32>
    %cst_78 = arith.constant 1.000000e+00 : f32
    %133 = vector.broadcast %cst_78 : f32 to vector<8x384xf32>
    %134 = arith.addf %133, %132 : vector<8x384xf32>
    %135 = arith.divf %133, %134 : vector<8x384xf32>
    %136 = vector.extract_strided_slice %135 {offsets = [0, 0], sizes = [8, 128], strides = [1, 1]} : vector<8x384xf32> to vector<8x128xf32>
    %137 = vector.extract_strided_slice %135 {offsets = [0, 128], sizes = [8, 128], strides = [1, 1]} : vector<8x384xf32> to vector<8x128xf32>
    %138 = vector.extract_strided_slice %135 {offsets = [0, 256], sizes = [8, 128], strides = [1, 1]} : vector<8x384xf32> to vector<8x128xf32>
    %139 = vector.extract_strided_slice %129 {offsets = [0, 384], sizes = [8, 128], strides = [1, 1]} : vector<8x512xf32> to vector<8x128xf32>
    %140 = math.tanh %139 : vector<8x128xf32>
    %c0_79 = arith.constant 0 : index
    %c0_80 = arith.constant 0 : index
    %141 = vector.load %arg12[%c0_79, %c0_80] : memref<8x128xf32, #tpu.memory_space<vmem>>, vector<8x128xf32>
    %142 = arith.mulf %137, %141 : vector<8x128xf32>
    %143 = arith.mulf %136, %140 : vector<8x128xf32>
    %144 = arith.addf %142, %143 : vector<8x128xf32>
    %145 = math.tanh %144 : vector<8x128xf32>
    %146 = arith.mulf %138, %145 : vector<8x128xf32>
    %c0_81 = arith.constant 0 : index
    %c0_82 = arith.constant 0 : index
    %147 = vector.load %arg12[%c0_81, %c0_82] : memref<8x128xf32, #tpu.memory_space<vmem>>, vector<8x128xf32>
    tpu.vector_store %arg12[%c0_81, %c0_82], %144 {strides = array<i32>} : memref<8x128xf32, #tpu.memory_space<vmem>>, vector<8x128xf32>,
    %c0_83 = arith.constant 0 : index
    %c0_84 = arith.constant 0 : index
    %148 = vector.load %arg11[%c0_83, %c0_84] : memref<8x128xf32, #tpu.memory_space<vmem>>, vector<8x128xf32>
    tpu.vector_store %arg11[%c0_83, %c0_84], %146 {strides = array<i32>} : memref<8x128xf32, #tpu.memory_space<vmem>>, vector<8x128xf32>,
    %c3_85 = arith.constant 3 : index
    %c0_86 = arith.constant 0 : index
    %c0_87 = arith.constant 0 : index
    %149 = vector.load %arg9[%c3_85, %c0_86, %c0_87] : memref<8x8x128xf32, #tpu.memory_space<vmem>>, vector<1x8x128xf32>
    %150 = vector.shape_cast %149 : vector<1x8x128xf32> to vector<8x128xf32>
    %151 = vector.shape_cast %146 : vector<8x128xf32> to vector<1x8x128xf32>
    tpu.vector_store %arg9[%c3_85, %c0_86, %c0_87], %151 {strides = array<i32>} : memref<8x8x128xf32, #tpu.memory_space<vmem>>, vector<1x8x128xf32>,
    %c3_i32 = arith.constant 3 : i32
    %152 = arith.addi %15, %c3_i32 : i32
    %153 = vector.broadcast %152 : i32 to vector<8x1xi32>
    %154 = arith.cmpi eq, %14, %153 : vector<8x1xi32>
    %c0_88 = arith.constant 0 : index
    %c0_89 = arith.constant 0 : index
    %155 = vector.load %arg13[%c0_88, %c0_89] : memref<8x128xf32, #tpu.memory_space<vmem>>, vector<8x128xf32>
    %156 = vector.shape_cast %154 : vector<8x1xi1> to vector<8x1xi1>
    %157 = vector.broadcast %156 : vector<8x1xi1> to vector<8x128xi1>
    %158 = arith.select %157, %146, %155 : vector<8x128xi1>, vector<8x128xf32>
    %c0_90 = arith.constant 0 : index
    %c0_91 = arith.constant 0 : index
    %159 = vector.load %arg13[%c0_90, %c0_91] : memref<8x128xf32, #tpu.memory_space<vmem>>, vector<8x128xf32>
    tpu.vector_store %arg13[%c0_90, %c0_91], %158 {strides = array<i32>} : memref<8x128xf32, #tpu.memory_space<vmem>>, vector<8x128xf32>,
    %c0_92 = arith.constant 0 : index
    %c0_93 = arith.constant 0 : index
    %160 = vector.load %arg11[%c0_92, %c0_93] : memref<8x128xf32, #tpu.memory_space<vmem>>, vector<8x128xf32>
    %161 = arith.truncf %160 : vector<8x128xf32> to vector<8x128xbf16>
    %cst_94 = arith.constant dense<0.000000e+00> : vector<8x512xf32>
    %162 = tpu.matmul %161, %13, %cst_94 {dimension_numbers = #tpu.dot_dimension_numbers<[1], [0], [0], [1], [0, 0, 1, 1], [], []>} : vector<8x128xbf16>, vector<128x512xbf16>, vector<8x512xf32> -> vector<8x512xf32>
    %c4 = arith.constant 4 : index
    %c0_95 = arith.constant 0 : index
    %c0_96 = arith.constant 0 : index
    %163 = vector.load %arg14[%c4, %c0_95, %c0_96] : memref<8x8x512xf32, #tpu.memory_space<vmem>>, vector<1x8x512xf32>
    %164 = vector.shape_cast %163 : vector<1x8x512xf32> to vector<8x512xf32>
    %165 = arith.addf %164, %162 : vector<8x512xf32>
    %166 = vector.extract_strided_slice %165 {offsets = [0, 0], sizes = [8, 384], strides = [1, 1]} : vector<8x512xf32> to vector<8x384xf32>
    %167 = arith.negf %166 : vector<8x384xf32>
    %168 = math.exp %167 : vector<8x384xf32>
    %cst_97 = arith.constant 1.000000e+00 : f32
    %169 = vector.broadcast %cst_97 : f32 to vector<8x384xf32>
    %170 = arith.addf %169, %168 : vector<8x384xf32>
    %171 = arith.divf %169, %170 : vector<8x384xf32>
    %172 = vector.extract_strided_slice %171 {offsets = [0, 0], sizes = [8, 128], strides = [1, 1]} : vector<8x384xf32> to vector<8x128xf32>
    %173 = vector.extract_strided_slice %171 {offsets = [0, 128], sizes = [8, 128], strides = [1, 1]} : vector<8x384xf32> to vector<8x128xf32>
    %174 = vector.extract_strided_slice %171 {offsets = [0, 256], sizes = [8, 128], strides = [1, 1]} : vector<8x384xf32> to vector<8x128xf32>
    %175 = vector.extract_strided_slice %165 {offsets = [0, 384], sizes = [8, 128], strides = [1, 1]} : vector<8x512xf32> to vector<8x128xf32>
    %176 = math.tanh %175 : vector<8x128xf32>
    %c0_98 = arith.constant 0 : index
    %c0_99 = arith.constant 0 : index
    %177 = vector.load %arg12[%c0_98, %c0_99] : memref<8x128xf32, #tpu.memory_space<vmem>>, vector<8x128xf32>
    %178 = arith.mulf %173, %177 : vector<8x128xf32>
    %179 = arith.mulf %172, %176 : vector<8x128xf32>
    %180 = arith.addf %178, %179 : vector<8x128xf32>
    %181 = math.tanh %180 : vector<8x128xf32>
    %182 = arith.mulf %174, %181 : vector<8x128xf32>
    %c0_100 = arith.constant 0 : index
    %c0_101 = arith.constant 0 : index
    %183 = vector.load %arg12[%c0_100, %c0_101] : memref<8x128xf32, #tpu.memory_space<vmem>>, vector<8x128xf32>
    tpu.vector_store %arg12[%c0_100, %c0_101], %180 {strides = array<i32>} : memref<8x128xf32, #tpu.memory_space<vmem>>, vector<8x128xf32>,
    %c0_102 = arith.constant 0 : index
    %c0_103 = arith.constant 0 : index
    %184 = vector.load %arg11[%c0_102, %c0_103] : memref<8x128xf32, #tpu.memory_space<vmem>>, vector<8x128xf32>
    tpu.vector_store %arg11[%c0_102, %c0_103], %182 {strides = array<i32>} : memref<8x128xf32, #tpu.memory_space<vmem>>, vector<8x128xf32>,
    %c4_104 = arith.constant 4 : index
    %c0_105 = arith.constant 0 : index
    %c0_106 = arith.constant 0 : index
    %185 = vector.load %arg9[%c4_104, %c0_105, %c0_106] : memref<8x8x128xf32, #tpu.memory_space<vmem>>, vector<1x8x128xf32>
    %186 = vector.shape_cast %185 : vector<1x8x128xf32> to vector<8x128xf32>
    %187 = vector.shape_cast %182 : vector<8x128xf32> to vector<1x8x128xf32>
    tpu.vector_store %arg9[%c4_104, %c0_105, %c0_106], %187 {strides = array<i32>} : memref<8x8x128xf32, #tpu.memory_space<vmem>>, vector<1x8x128xf32>,
    %c4_i32 = arith.constant 4 : i32
    %188 = arith.addi %15, %c4_i32 : i32
    %189 = vector.broadcast %188 : i32 to vector<8x1xi32>
    %190 = arith.cmpi eq, %14, %189 : vector<8x1xi32>
    %c0_107 = arith.constant 0 : index
    %c0_108 = arith.constant 0 : index
    %191 = vector.load %arg13[%c0_107, %c0_108] : memref<8x128xf32, #tpu.memory_space<vmem>>, vector<8x128xf32>
    %192 = vector.shape_cast %190 : vector<8x1xi1> to vector<8x1xi1>
    %193 = vector.broadcast %192 : vector<8x1xi1> to vector<8x128xi1>
    %194 = arith.select %193, %182, %191 : vector<8x128xi1>, vector<8x128xf32>
    %c0_109 = arith.constant 0 : index
    %c0_110 = arith.constant 0 : index
    %195 = vector.load %arg13[%c0_109, %c0_110] : memref<8x128xf32, #tpu.memory_space<vmem>>, vector<8x128xf32>
    tpu.vector_store %arg13[%c0_109, %c0_110], %194 {strides = array<i32>} : memref<8x128xf32, #tpu.memory_space<vmem>>, vector<8x128xf32>,
    %c0_111 = arith.constant 0 : index
    %c0_112 = arith.constant 0 : index
    %196 = vector.load %arg11[%c0_111, %c0_112] : memref<8x128xf32, #tpu.memory_space<vmem>>, vector<8x128xf32>
    %197 = arith.truncf %196 : vector<8x128xf32> to vector<8x128xbf16>
    %cst_113 = arith.constant dense<0.000000e+00> : vector<8x512xf32>
    %198 = tpu.matmul %197, %13, %cst_113 {dimension_numbers = #tpu.dot_dimension_numbers<[1], [0], [0], [1], [0, 0, 1, 1], [], []>} : vector<8x128xbf16>, vector<128x512xbf16>, vector<8x512xf32> -> vector<8x512xf32>
    %c5 = arith.constant 5 : index
    %c0_114 = arith.constant 0 : index
    %c0_115 = arith.constant 0 : index
    %199 = vector.load %arg14[%c5, %c0_114, %c0_115] : memref<8x8x512xf32, #tpu.memory_space<vmem>>, vector<1x8x512xf32>
    %200 = vector.shape_cast %199 : vector<1x8x512xf32> to vector<8x512xf32>
    %201 = arith.addf %200, %198 : vector<8x512xf32>
    %202 = vector.extract_strided_slice %201 {offsets = [0, 0], sizes = [8, 384], strides = [1, 1]} : vector<8x512xf32> to vector<8x384xf32>
    %203 = arith.negf %202 : vector<8x384xf32>
    %204 = math.exp %203 : vector<8x384xf32>
    %cst_116 = arith.constant 1.000000e+00 : f32
    %205 = vector.broadcast %cst_116 : f32 to vector<8x384xf32>
    %206 = arith.addf %205, %204 : vector<8x384xf32>
    %207 = arith.divf %205, %206 : vector<8x384xf32>
    %208 = vector.extract_strided_slice %207 {offsets = [0, 0], sizes = [8, 128], strides = [1, 1]} : vector<8x384xf32> to vector<8x128xf32>
    %209 = vector.extract_strided_slice %207 {offsets = [0, 128], sizes = [8, 128], strides = [1, 1]} : vector<8x384xf32> to vector<8x128xf32>
    %210 = vector.extract_strided_slice %207 {offsets = [0, 256], sizes = [8, 128], strides = [1, 1]} : vector<8x384xf32> to vector<8x128xf32>
    %211 = vector.extract_strided_slice %201 {offsets = [0, 384], sizes = [8, 128], strides = [1, 1]} : vector<8x512xf32> to vector<8x128xf32>
    %212 = math.tanh %211 : vector<8x128xf32>
    %c0_117 = arith.constant 0 : index
    %c0_118 = arith.constant 0 : index
    %213 = vector.load %arg12[%c0_117, %c0_118] : memref<8x128xf32, #tpu.memory_space<vmem>>, vector<8x128xf32>
    %214 = arith.mulf %209, %213 : vector<8x128xf32>
    %215 = arith.mulf %208, %212 : vector<8x128xf32>
    %216 = arith.addf %214, %215 : vector<8x128xf32>
    %217 = math.tanh %216 : vector<8x128xf32>
    %218 = arith.mulf %210, %217 : vector<8x128xf32>
    %c0_119 = arith.constant 0 : index
    %c0_120 = arith.constant 0 : index
    %219 = vector.load %arg12[%c0_119, %c0_120] : memref<8x128xf32, #tpu.memory_space<vmem>>, vector<8x128xf32>
    tpu.vector_store %arg12[%c0_119, %c0_120], %216 {strides = array<i32>} : memref<8x128xf32, #tpu.memory_space<vmem>>, vector<8x128xf32>,
    %c0_121 = arith.constant 0 : index
    %c0_122 = arith.constant 0 : index
    %220 = vector.load %arg11[%c0_121, %c0_122] : memref<8x128xf32, #tpu.memory_space<vmem>>, vector<8x128xf32>
    tpu.vector_store %arg11[%c0_121, %c0_122], %218 {strides = array<i32>} : memref<8x128xf32, #tpu.memory_space<vmem>>, vector<8x128xf32>,
    %c5_123 = arith.constant 5 : index
    %c0_124 = arith.constant 0 : index
    %c0_125 = arith.constant 0 : index
    %221 = vector.load %arg9[%c5_123, %c0_124, %c0_125] : memref<8x8x128xf32, #tpu.memory_space<vmem>>, vector<1x8x128xf32>
    %222 = vector.shape_cast %221 : vector<1x8x128xf32> to vector<8x128xf32>
    %223 = vector.shape_cast %218 : vector<8x128xf32> to vector<1x8x128xf32>
    tpu.vector_store %arg9[%c5_123, %c0_124, %c0_125], %223 {strides = array<i32>} : memref<8x8x128xf32, #tpu.memory_space<vmem>>, vector<1x8x128xf32>,
    %c5_i32 = arith.constant 5 : i32
    %224 = arith.addi %15, %c5_i32 : i32
    %225 = vector.broadcast %224 : i32 to vector<8x1xi32>
    %226 = arith.cmpi eq, %14, %225 : vector<8x1xi32>
    %c0_126 = arith.constant 0 : index
    %c0_127 = arith.constant 0 : index
    %227 = vector.load %arg13[%c0_126, %c0_127] : memref<8x128xf32, #tpu.memory_space<vmem>>, vector<8x128xf32>
    %228 = vector.shape_cast %226 : vector<8x1xi1> to vector<8x1xi1>
    %229 = vector.broadcast %228 : vector<8x1xi1> to vector<8x128xi1>
    %230 = arith.select %229, %218, %227 : vector<8x128xi1>, vector<8x128xf32>
    %c0_128 = arith.constant 0 : index
    %c0_129 = arith.constant 0 : index
    %231 = vector.load %arg13[%c0_128, %c0_129] : memref<8x128xf32, #tpu.memory_space<vmem>>, vector<8x128xf32>
    tpu.vector_store %arg13[%c0_128, %c0_129], %230 {strides = array<i32>} : memref<8x128xf32, #tpu.memory_space<vmem>>, vector<8x128xf32>,
    %c0_130 = arith.constant 0 : index
    %c0_131 = arith.constant 0 : index
    %232 = vector.load %arg11[%c0_130, %c0_131] : memref<8x128xf32, #tpu.memory_space<vmem>>, vector<8x128xf32>
    %233 = arith.truncf %232 : vector<8x128xf32> to vector<8x128xbf16>
    %cst_132 = arith.constant dense<0.000000e+00> : vector<8x512xf32>
    %234 = tpu.matmul %233, %13, %cst_132 {dimension_numbers = #tpu.dot_dimension_numbers<[1], [0], [0], [1], [0, 0, 1, 1], [], []>} : vector<8x128xbf16>, vector<128x512xbf16>, vector<8x512xf32> -> vector<8x512xf32>
    %c6 = arith.constant 6 : index
    %c0_133 = arith.constant 0 : index
    %c0_134 = arith.constant 0 : index
    %235 = vector.load %arg14[%c6, %c0_133, %c0_134] : memref<8x8x512xf32, #tpu.memory_space<vmem>>, vector<1x8x512xf32>
    %236 = vector.shape_cast %235 : vector<1x8x512xf32> to vector<8x512xf32>
    %237 = arith.addf %236, %234 : vector<8x512xf32>
    %238 = vector.extract_strided_slice %237 {offsets = [0, 0], sizes = [8, 384], strides = [1, 1]} : vector<8x512xf32> to vector<8x384xf32>
    %239 = arith.negf %238 : vector<8x384xf32>
    %240 = math.exp %239 : vector<8x384xf32>
    %cst_135 = arith.constant 1.000000e+00 : f32
    %241 = vector.broadcast %cst_135 : f32 to vector<8x384xf32>
    %242 = arith.addf %241, %240 : vector<8x384xf32>
    %243 = arith.divf %241, %242 : vector<8x384xf32>
    %244 = vector.extract_strided_slice %243 {offsets = [0, 0], sizes = [8, 128], strides = [1, 1]} : vector<8x384xf32> to vector<8x128xf32>
    %245 = vector.extract_strided_slice %243 {offsets = [0, 128], sizes = [8, 128], strides = [1, 1]} : vector<8x384xf32> to vector<8x128xf32>
    %246 = vector.extract_strided_slice %243 {offsets = [0, 256], sizes = [8, 128], strides = [1, 1]} : vector<8x384xf32> to vector<8x128xf32>
    %247 = vector.extract_strided_slice %237 {offsets = [0, 384], sizes = [8, 128], strides = [1, 1]} : vector<8x512xf32> to vector<8x128xf32>
    %248 = math.tanh %247 : vector<8x128xf32>
    %c0_136 = arith.constant 0 : index
    %c0_137 = arith.constant 0 : index
    %249 = vector.load %arg12[%c0_136, %c0_137] : memref<8x128xf32, #tpu.memory_space<vmem>>, vector<8x128xf32>
    %250 = arith.mulf %245, %249 : vector<8x128xf32>
    %251 = arith.mulf %244, %248 : vector<8x128xf32>
    %252 = arith.addf %250, %251 : vector<8x128xf32>
    %253 = math.tanh %252 : vector<8x128xf32>
    %254 = arith.mulf %246, %253 : vector<8x128xf32>
    %c0_138 = arith.constant 0 : index
    %c0_139 = arith.constant 0 : index
    %255 = vector.load %arg12[%c0_138, %c0_139] : memref<8x128xf32, #tpu.memory_space<vmem>>, vector<8x128xf32>
    tpu.vector_store %arg12[%c0_138, %c0_139], %252 {strides = array<i32>} : memref<8x128xf32, #tpu.memory_space<vmem>>, vector<8x128xf32>,
    %c0_140 = arith.constant 0 : index
    %c0_141 = arith.constant 0 : index
    %256 = vector.load %arg11[%c0_140, %c0_141] : memref<8x128xf32, #tpu.memory_space<vmem>>, vector<8x128xf32>
    tpu.vector_store %arg11[%c0_140, %c0_141], %254 {strides = array<i32>} : memref<8x128xf32, #tpu.memory_space<vmem>>, vector<8x128xf32>,
    %c6_142 = arith.constant 6 : index
    %c0_143 = arith.constant 0 : index
    %c0_144 = arith.constant 0 : index
    %257 = vector.load %arg9[%c6_142, %c0_143, %c0_144] : memref<8x8x128xf32, #tpu.memory_space<vmem>>, vector<1x8x128xf32>
    %258 = vector.shape_cast %257 : vector<1x8x128xf32> to vector<8x128xf32>
    %259 = vector.shape_cast %254 : vector<8x128xf32> to vector<1x8x128xf32>
    tpu.vector_store %arg9[%c6_142, %c0_143, %c0_144], %259 {strides = array<i32>} : memref<8x8x128xf32, #tpu.memory_space<vmem>>, vector<1x8x128xf32>,
    %c6_i32 = arith.constant 6 : i32
    %260 = arith.addi %15, %c6_i32 : i32
    %261 = vector.broadcast %260 : i32 to vector<8x1xi32>
    %262 = arith.cmpi eq, %14, %261 : vector<8x1xi32>
    %c0_145 = arith.constant 0 : index
    %c0_146 = arith.constant 0 : index
    %263 = vector.load %arg13[%c0_145, %c0_146] : memref<8x128xf32, #tpu.memory_space<vmem>>, vector<8x128xf32>
    %264 = vector.shape_cast %262 : vector<8x1xi1> to vector<8x1xi1>
    %265 = vector.broadcast %264 : vector<8x1xi1> to vector<8x128xi1>
    %266 = arith.select %265, %254, %263 : vector<8x128xi1>, vector<8x128xf32>
    %c0_147 = arith.constant 0 : index
    %c0_148 = arith.constant 0 : index
    %267 = vector.load %arg13[%c0_147, %c0_148] : memref<8x128xf32, #tpu.memory_space<vmem>>, vector<8x128xf32>
    tpu.vector_store %arg13[%c0_147, %c0_148], %266 {strides = array<i32>} : memref<8x128xf32, #tpu.memory_space<vmem>>, vector<8x128xf32>,
    %c0_149 = arith.constant 0 : index
    %c0_150 = arith.constant 0 : index
    %268 = vector.load %arg11[%c0_149, %c0_150] : memref<8x128xf32, #tpu.memory_space<vmem>>, vector<8x128xf32>
    %269 = arith.truncf %268 : vector<8x128xf32> to vector<8x128xbf16>
    %cst_151 = arith.constant dense<0.000000e+00> : vector<8x512xf32>
    %270 = tpu.matmul %269, %13, %cst_151 {dimension_numbers = #tpu.dot_dimension_numbers<[1], [0], [0], [1], [0, 0, 1, 1], [], []>} : vector<8x128xbf16>, vector<128x512xbf16>, vector<8x512xf32> -> vector<8x512xf32>
    %c7 = arith.constant 7 : index
    %c0_152 = arith.constant 0 : index
    %c0_153 = arith.constant 0 : index
    %271 = vector.load %arg14[%c7, %c0_152, %c0_153] : memref<8x8x512xf32, #tpu.memory_space<vmem>>, vector<1x8x512xf32>
    %272 = vector.shape_cast %271 : vector<1x8x512xf32> to vector<8x512xf32>
    %273 = arith.addf %272, %270 : vector<8x512xf32>
    %274 = vector.extract_strided_slice %273 {offsets = [0, 0], sizes = [8, 384], strides = [1, 1]} : vector<8x512xf32> to vector<8x384xf32>
    %275 = arith.negf %274 : vector<8x384xf32>
    %276 = math.exp %275 : vector<8x384xf32>
    %cst_154 = arith.constant 1.000000e+00 : f32
    %277 = vector.broadcast %cst_154 : f32 to vector<8x384xf32>
    %278 = arith.addf %277, %276 : vector<8x384xf32>
    %279 = arith.divf %277, %278 : vector<8x384xf32>
    %280 = vector.extract_strided_slice %279 {offsets = [0, 0], sizes = [8, 128], strides = [1, 1]} : vector<8x384xf32> to vector<8x128xf32>
    %281 = vector.extract_strided_slice %279 {offsets = [0, 128], sizes = [8, 128], strides = [1, 1]} : vector<8x384xf32> to vector<8x128xf32>
    %282 = vector.extract_strided_slice %279 {offsets = [0, 256], sizes = [8, 128], strides = [1, 1]} : vector<8x384xf32> to vector<8x128xf32>
    %283 = vector.extract_strided_slice %273 {offsets = [0, 384], sizes = [8, 128], strides = [1, 1]} : vector<8x512xf32> to vector<8x128xf32>
    %284 = math.tanh %283 : vector<8x128xf32>
    %c0_155 = arith.constant 0 : index
    %c0_156 = arith.constant 0 : index
    %285 = vector.load %arg12[%c0_155, %c0_156] : memref<8x128xf32, #tpu.memory_space<vmem>>, vector<8x128xf32>
    %286 = arith.mulf %281, %285 : vector<8x128xf32>
    %287 = arith.mulf %280, %284 : vector<8x128xf32>
    %288 = arith.addf %286, %287 : vector<8x128xf32>
    %289 = math.tanh %288 : vector<8x128xf32>
    %290 = arith.mulf %282, %289 : vector<8x128xf32>
    %c0_157 = arith.constant 0 : index
    %c0_158 = arith.constant 0 : index
    %291 = vector.load %arg12[%c0_157, %c0_158] : memref<8x128xf32, #tpu.memory_space<vmem>>, vector<8x128xf32>
    tpu.vector_store %arg12[%c0_157, %c0_158], %288 {strides = array<i32>} : memref<8x128xf32, #tpu.memory_space<vmem>>, vector<8x128xf32>,
    %c0_159 = arith.constant 0 : index
    %c0_160 = arith.constant 0 : index
    %292 = vector.load %arg11[%c0_159, %c0_160] : memref<8x128xf32, #tpu.memory_space<vmem>>, vector<8x128xf32>
    tpu.vector_store %arg11[%c0_159, %c0_160], %290 {strides = array<i32>} : memref<8x128xf32, #tpu.memory_space<vmem>>, vector<8x128xf32>,
    %c7_161 = arith.constant 7 : index
    %c0_162 = arith.constant 0 : index
    %c0_163 = arith.constant 0 : index
    %293 = vector.load %arg9[%c7_161, %c0_162, %c0_163] : memref<8x8x128xf32, #tpu.memory_space<vmem>>, vector<1x8x128xf32>
    %294 = vector.shape_cast %293 : vector<1x8x128xf32> to vector<8x128xf32>
    %295 = vector.shape_cast %290 : vector<8x128xf32> to vector<1x8x128xf32>
    tpu.vector_store %arg9[%c7_161, %c0_162, %c0_163], %295 {strides = array<i32>} : memref<8x8x128xf32, #tpu.memory_space<vmem>>, vector<1x8x128xf32>,
    %c7_i32 = arith.constant 7 : i32
    %296 = arith.addi %15, %c7_i32 : i32
    %297 = vector.broadcast %296 : i32 to vector<8x1xi32>
    %298 = arith.cmpi eq, %14, %297 : vector<8x1xi32>
    %c0_164 = arith.constant 0 : index
    %c0_165 = arith.constant 0 : index
    %299 = vector.load %arg13[%c0_164, %c0_165] : memref<8x128xf32, #tpu.memory_space<vmem>>, vector<8x128xf32>
    %300 = vector.shape_cast %298 : vector<8x1xi1> to vector<8x1xi1>
    %301 = vector.broadcast %300 : vector<8x1xi1> to vector<8x128xi1>
    %302 = arith.select %301, %290, %299 : vector<8x128xi1>, vector<8x128xf32>
    %c0_166 = arith.constant 0 : index
    %c0_167 = arith.constant 0 : index
    %303 = vector.load %arg13[%c0_166, %c0_167] : memref<8x128xf32, #tpu.memory_space<vmem>>, vector<8x128xf32>
    tpu.vector_store %arg13[%c0_166, %c0_167], %302 {strides = array<i32>} : memref<8x128xf32, #tpu.memory_space<vmem>>, vector<8x128xf32>,
    %c0_i32_168 = arith.constant 0 : i32
    %304 = arith.cmpi eq, %arg1, %c0_i32_168 : i32
    %305 = arith.extui %304 : i1 to i32
    %c0_i32_169 = arith.constant 0 : i32
    %306 = arith.cmpi ne, %305, %c0_i32_169 : i32
    scf.if %306 {
      %c0_170 = arith.constant 0 : index
      %c0_171 = arith.constant 0 : index
      %307 = vector.load %arg13[%c0_170, %c0_171] : memref<8x128xf32, #tpu.memory_space<vmem>>, vector<8x128xf32>
      %308 = arith.truncf %307 : vector<8x128xf32> to vector<8x128xbf16>
      %c0_172 = arith.constant 0 : index
      %c0_173 = arith.constant 0 : index
      %309 = vector.load %arg7[%c0_172, %c0_173] : memref<128x128xbf16, #tpu.memory_space<vmem>>, vector<128x128xbf16>
      %cst_174 = arith.constant dense<0.000000e+00> : vector<8x128xf32>
      %310 = tpu.matmul %308, %309, %cst_174 {dimension_numbers = #tpu.dot_dimension_numbers<[1], [0], [0], [1], [0, 0, 1, 1], [], []>} : vector<8x128xbf16>, vector<128x128xbf16>, vector<8x128xf32> -> vector<8x128xf32>
      %c0_175 = arith.constant 0 : index
      %c0_176 = arith.constant 0 : index
      %311 = vector.load %arg8[%c0_175, %c0_176] : memref<1x128xf32, #tpu.memory_space<vmem>>, vector<1x128xf32>
      %312 = vector.broadcast %311 : vector<1x128xf32> to vector<8x128xf32>
      %313 = arith.addf %310, %312 : vector<8x128xf32>
      %c0_177 = arith.constant 0 : index
      %c0_178 = arith.constant 0 : index
      %314 = vector.load %arg10[%c0_177, %c0_178] : memref<8x128xf32, #tpu.memory_space<vmem>>, vector<8x128xf32>
      tpu.vector_store %arg10[%c0_177, %c0_178], %313 {strides = array<i32>} : memref<8x128xf32, #tpu.memory_space<vmem>>, vector<8x128xf32>,
    } else {
    }
    return
  }
  func.func @transform_0(%arg0: i32, %arg1: i32) -> (i32, i32, i32) {
    %c0_i32 = arith.constant 0 : i32
    %c0_i32_0 = arith.constant 0 : i32
    return %arg1, %arg0, %c0_i32 : i32, i32, i32
  }
  func.func @transform_1(%arg0: i32, %arg1: i32) -> (i32, i32) {
    %c0_i32 = arith.constant 0 : i32
    %c0_i32_0 = arith.constant 0 : i32
    return %arg0, %c0_i32 : i32, i32
  }
  func.func @transform_2(%arg0: i32, %arg1: i32) -> (i32, i32) {
    %c0_i32 = arith.constant 0 : i32
    %c0_i32_0 = arith.constant 0 : i32
    %c0_i32_1 = arith.constant 0 : i32
    return %c0_i32, %c0_i32_0 : i32, i32
  }
  func.func @transform_3(%arg0: i32, %arg1: i32) -> (i32, i32) {
    %c0_i32 = arith.constant 0 : i32
    %c0_i32_0 = arith.constant 0 : i32
    %c0_i32_1 = arith.constant 0 : i32
    return %c0_i32, %c0_i32_0 : i32, i32
  }
  func.func @transform_4(%arg0: i32, %arg1: i32) -> (i32, i32) {
    %c0_i32 = arith.constant 0 : i32
    %c0_i32_0 = arith.constant 0 : i32
    %c0_i32_1 = arith.constant 0 : i32
    return %c0_i32, %c0_i32_0 : i32, i32
  }
  func.func @transform_5(%arg0: i32, %arg1: i32) -> (i32, i32) {
    %c0_i32 = arith.constant 0 : i32
    %c0_i32_0 = arith.constant 0 : i32
    %c0_i32_1 = arith.constant 0 : i32
    return %c0_i32, %c0_i32_0 : i32, i32
  }
  func.func @transform_6(%arg0: i32, %arg1: i32) -> (i32, i32) {
    %c0_i32 = arith.constant 0 : i32
    %c0_i32_0 = arith.constant 0 : i32
    %c0_i32_1 = arith.constant 0 : i32
    return %c0_i32, %c0_i32_0 : i32, i32
  }
  func.func @transform_7(%arg0: i32, %arg1: i32) -> (i32, i32, i32) {
    %c0_i32 = arith.constant 0 : i32
    %c0_i32_0 = arith.constant 0 : i32
    return %arg1, %arg0, %c0_i32 : i32, i32, i32
  }
  func.func @transform_8(%arg0: i32, %arg1: i32) -> (i32, i32) {
    %c0_i32 = arith.constant 0 : i32
    %c0_i32_0 = arith.constant 0 : i32
    return %arg0, %c0_i32 : i32, i32
  }
}

</mosaic_0001>

<llo_original>
// kernel: tpu_custom_call.1
$region0: #{tpu_custom_call.1}
  #allocation0 [shape = 'u32[]', space=smem, size = 0x4, offset = 0x4, fixed_abs, tag = 'smem constant byte address 0x4 - core index']
  #allocation1 [shape = 'u32[144,128]{1,0:T(1,128)}', space=vmem, size = 0x12000, scoped, tag = 'internal scratch']
  #allocation2 [shape = 'f32[8,128]{1,0:T(8,128)}', space=vmem, size = 0x1000, scoped, tag = 'scratch operand']
  #allocation3 [shape = 'f32[8,128]{1,0:T(8,128)}', space=vmem, size = 0x1000, scoped, tag = 'scratch operand']
  #allocation4 [shape = 'f32[8,128]{1,0:T(8,128)}', space=vmem, size = 0x1000, scoped, tag = 'scratch operand']
  #allocation5 [shape = 'f32[8,8,512]{2,1,0:T(8,128)}', space=vmem, size = 0x20000, scoped, tag = 'scratch operand']
  %s0 = inlined_call_operand.hbm [shape: f32[8,8,32], index: 0, kind: input, shape index: {}]
  %s1 = inlined_call_operand.vmem [shape: s32[8,1], index: 1, kind: input, shape index: {}]
  %s2 = inlined_call_operand.hbm [shape: bf16[32,512], index: 2, kind: input, shape index: {}]
  %s3 = inlined_call_operand.hbm [shape: bf16[128,512], index: 3, kind: input, shape index: {}]
  %s4 = inlined_call_operand.vmem [shape: f32[1,512], index: 4, kind: input, shape index: {}]
  %s5 = inlined_call_operand.hbm [shape: bf16[128,128], index: 5, kind: input, shape index: {}]
  %s6 = inlined_call_operand.vmem [shape: f32[1,128], index: 6, kind: input, shape index: {}]
  %s7 = inlined_call_operand.hbm [shape: f32[8,8,128], index: 7, kind: output, shape index: {0}]
  %s8 = inlined_call_operand.hbm [shape: f32[8,128], index: 8, kind: output, shape index: {1}]
  %9 = xla_tuple %s7, %s8
  %s10 = sld [smem:[#allocation0]]
  $region70: #{tpu_custom_call.1} parent=0
    _
  %s12 = ssub.s32 1, %s10
  %s13 = scalar_select 0, %s12, %s10
  $region1: #{tpu_custom_call.1} parent=0
    #allocation6 [shape = 'u8[32768]{0}', space=vmem, size = 0x8000, scoped, tag = 'input window, operand 0, single buffered']
    #allocation7 [shape = 's32[1]{0}', space=sflag, size = 0x4, scoped, tag = 'scoped memory for tpu_custom_call.1']
    #allocation8 [shape = 's32[1]{0}', space=sflag, size = 0x4, scoped, tag = 'scoped memory for tpu_custom_call.1']
    #allocation9 [shape = 'u8[32768]{0}', space=vmem, size = 0x8000, scoped, tag = 'input window, operand 2, single buffered']
    #allocation10 [shape = 's32[1]{0}', space=sflag, size = 0x4, scoped, tag = 'scoped memory for tpu_custom_call.1']
    #allocation11 [shape = 'u8[131072]{0}', space=vmem, size = 0x20000, scoped, tag = 'input window, operand 3, single buffered']
    #allocation12 [shape = 'u8[32768]{0}', space=vmem, size = 0x8000, scoped, tag = 'input window, operand 5, single buffered']
    #allocation13 [shape = 's32[1]{0}', space=sflag, size = 0x4, scoped, tag = 'scoped memory for tpu_custom_call.1']
    #allocation14 [shape = 'u8[32768]{0}', space=vmem, size = 0x8000, scoped, tag = 'output window, operand 0, single buffered']
    #allocation15 [shape = 'u8[4096]{0}', space=vmem, size = 0x1000, scoped, tag = 'output window, operand 1, single buffered']
    #allocation16 [shape = 's32[1]{0}', space=sflag, size = 0x4, scoped, tag = 'scoped memory for tpu_custom_call.1']
    %14 = vsyncpa [#allocation7], 0
    %15 = vsyncpa [#allocation10], 0
    %16 = vsyncpa [#allocation13], 0
    %17 = vsyncpa [#allocation8], 0
    %18 = vsyncpa [#allocation16], 0
    // Predicated region
    $region2: #{tpu_custom_call.1} parent=1 // pred_check
      _
    $region3: #{tpu_custom_call.1} parent=1 // pred_check_branch
      %20 = sbr.rel (0) target = $region5
    $region4: #{tpu_custom_call.1} parent=1 // pred_region
      %s22 = ssub.s32 1024, 1024
      %23 = vsyncadd [#allocation7], %s22
      %s24 = sshll.u32 [#allocation6], 4
      %s25 = int_to_ptr.vmem [resolvable:$true] %s24
      %30 = dma.hbm_to_vmem [thread:$0]  %s0, 1024, %s25, [#allocation7], 128, 128, 8
    $region5: #{tpu_custom_call.1} parent=1 // pred_fallthru
      _
    // Predicated region
    $region6: #{tpu_custom_call.1} parent=1 // pred_check
      _
    $region7: #{tpu_custom_call.1} parent=1 // pred_check_branch
      %32 = sbr.rel (0) target = $region9
    $region8: #{tpu_custom_call.1} parent=1 // pred_region
      _
    $region9: #{tpu_custom_call.1} parent=1 // pred_fallthru
      _
    // Predicated region
    $region10: #{tpu_custom_call.1} parent=1 // pred_check
      _
    $region11: #{tpu_custom_call.1} parent=1 // pred_check_branch
      %34 = sbr.rel (0) target = $region13
    $region12: #{tpu_custom_call.1} parent=1 // pred_region
      %s36 = ssub.s32 1024, 1024
      %37 = vsyncadd [#allocation10], %s36
      %s38 = sshll.u32 [#allocation9], 4
      %s39 = int_to_ptr.vmem [resolvable:$true] %s38
      %44 = dma.hbm_to_vmem [thread:$0]  %s2, 1024, %s39, [#allocation10], 256, 256, 16
    $region13: #{tpu_custom_call.1} parent=1 // pred_fallthru
      _
    // Predicated region
    $region14: #{tpu_custom_call.1} parent=1 // pred_check
      _
    $region15: #{tpu_custom_call.1} parent=1 // pred_check_branch
      %46 = sbr.rel (0) target = $region17
    $region16: #{tpu_custom_call.1} parent=1 // pred_region
      %s48 = ssub.s32 4096, 4096
      %49 = vsyncadd [#allocation10], %s48
      %s50 = sshll.u32 [#allocation11], 4
      %s51 = int_to_ptr.vmem [resolvable:$true] %s50
      %56 = dma.hbm_to_vmem [thread:$0]  %s3, 4096, %s51, [#allocation10], 256, 256, 16
    $region17: #{tpu_custom_call.1} parent=1 // pred_fallthru
      _
    // Predicated region
    $region18: #{tpu_custom_call.1} parent=1 // pred_check
      _
    $region19: #{tpu_custom_call.1} parent=1 // pred_check_branch
      %58 = sbr.rel (0) target = $region21
    $region20: #{tpu_custom_call.1} parent=1 // pred_region
      _
    $region21: #{tpu_custom_call.1} parent=1 // pred_fallthru
      _
    // Predicated region
    $region22: #{tpu_custom_call.1} parent=1 // pred_check
      _
    $region23: #{tpu_custom_call.1} parent=1 // pred_check_branch
      %60 = sbr.rel (0) target = $region25
    $region24: #{tpu_custom_call.1} parent=1 // pred_region
      %s62 = ssub.s32 1024, 1024
      %63 = vsyncadd [#allocation13], %s62
      %s64 = sshll.u32 [#allocation12], 4
      %s65 = int_to_ptr.vmem [resolvable:$true] %s64
      %70 = dma.hbm_to_vmem [thread:$0]  %s5, 1024, %s65, [#allocation13], 64, 64, 4
    $region25: #{tpu_custom_call.1} parent=1 // pred_fallthru
      _
    // Predicated region
    $region26: #{tpu_custom_call.1} parent=1 // pred_check
      _
    $region27: #{tpu_custom_call.1} parent=1 // pred_check_branch
      %72 = sbr.rel (0) target = $region29
    $region28: #{tpu_custom_call.1} parent=1 // pred_region
      _
    $region29: #{tpu_custom_call.1} parent=1 // pred_fallthru
      _
    // Predicated region
    $region30: #{tpu_custom_call.1} parent=1 // pred_check
      _
    $region31: #{tpu_custom_call.1} parent=1 // pred_check_branch
      %74 = sbr.rel (0) target = $region33
    $region32: #{tpu_custom_call.1} parent=1 // pred_region
      %75 = dma.done [#allocation7], 1024
    $region33: #{tpu_custom_call.1} parent=1 // pred_fallthru
      _
    // Predicated region
    $region34: #{tpu_custom_call.1} parent=1 // pred_check
      _
    $region35: #{tpu_custom_call.1} parent=1 // pred_check_branch
      %77 = sbr.rel (0) target = $region37
    $region36: #{tpu_custom_call.1} parent=1 // pred_region
      %78 = dma.done [#allocation10], 1024
    $region37: #{tpu_custom_call.1} parent=1 // pred_fallthru
      _
    // Predicated region
    $region38: #{tpu_custom_call.1} parent=1 // pred_check
      _
    $region39: #{tpu_custom_call.1} parent=1 // pred_check_branch
      %80 = sbr.rel (0) target = $region41
    $region40: #{tpu_custom_call.1} parent=1 // pred_region
      %81 = dma.done [#allocation10], 4096
    $region41: #{tpu_custom_call.1} parent=1 // pred_fallthru
      _
    // Predicated region
    $region42: #{tpu_custom_call.1} parent=1 // pred_check
      _
    $region43: #{tpu_custom_call.1} parent=1 // pred_check_branch
      %83 = sbr.rel (0) target = $region45
    $region44: #{tpu_custom_call.1} parent=1 // pred_region
      %84 = dma.done [#allocation13], 1024
    $region45: #{tpu_custom_call.1} parent=1 // pred_fallthru
      _
    %p86 = scmp.eq.s32.totalorder 0, 0
    // Predicated region
    $region46: #{tpu_custom_call.1} parent=1 // pred_check
      %p87 = pneg %p86
    $region47: #{tpu_custom_call.1} parent=1 // pred_check_branch
      %89 = sbr.rel (%p87) target = $region49
    $region48: #{tpu_custom_call.1} parent=1 // pred_region
      %90 = vst [vmem:[#allocation2] sm:$0xff] 0.0
      %91 = vst [vmem:[#allocation3] sm:$0xff] 0.0
      %92 = vst [vmem:[#allocation4] sm:$0xff] 0.0
    $region49: #{tpu_custom_call.1} parent=1 // pred_fallthru
      _
    %v93 = vld [vmem:[#allocation6] sm:$0xff]
    %v94 = vld [vmem:[#allocation6 + $0x8] sm:$0xff]
    %v95 = vld [vmem:[#allocation6 + $0x10] sm:$0xff]
    %v96 = vld [vmem:[#allocation6 + $0x18] sm:$0xff]
    %v97 = vld [vmem:[#allocation6 + $0x20] sm:$0xff]
    %v98 = vld [vmem:[#allocation6 + $0x28] sm:$0xff]
    %v99 = vld [vmem:[#allocation6 + $0x30] sm:$0xff]
    %v100 = vld [vmem:[#allocation6 + $0x38] sm:$0xff]
    %v101 = vpack.c.bf16 %v94, %v93
    %v102 = vpack.c.bf16 %v96, %v95
    %v103 = vpack.c.bf16 %v98, %v97
    %v104 = vpack.c.bf16 %v100, %v99
    %v105 = vld [vmem:[#allocation9] sm:$0xff]
    %v106 = vld [vmem:[#allocation9 + $0x8] sm:$0xff]
    %v107 = vld [vmem:[#allocation9 + $0x10] sm:$0xff]
    %v108 = vld [vmem:[#allocation9 + $0x18] sm:$0xff]
    %v109 = vld [vmem:[#allocation9 + $0x20] sm:$0xff]
    %v110 = vld [vmem:[#allocation9 + $0x28] sm:$0xff]
    %v111 = vld [vmem:[#allocation9 + $0x30] sm:$0xff]
    %v112 = vld [vmem:[#allocation9 + $0x38] sm:$0xff]
    %v113 = vld [vmem:[%s4] sm:$0xf]
    %v115 = vlaneseq
    %v116 = vshrl.u32 %v115, 7
    %v117 = vsub.s32 0, %v116
    %v118 = vrot.slane %v113, %v117
    %v119 = vlaneseq
    %v120 = vshrl.u32 %v119, 7
    %v121 = vsub.s32 1, %v120
    %v122 = vrot.slane %v113, %v121
    %v123 = vlaneseq
    %v124 = vshrl.u32 %v123, 7
    %v125 = vsub.s32 2, %v124
    %v126 = vrot.slane %v113, %v125
    %v127 = vlaneseq
    %v128 = vshrl.u32 %v127, 7
    %v129 = vsub.s32 3, %v128
    %v130 = vrot.slane %v113, %v129
    %v143 = vunpack.c.l.b16 %v105
    %v144 = vunpack.c.h.b16 %v105
    %v145 = vunpack.c.l.b16 %v106
    %v146 = vunpack.c.h.b16 %v106
    %v147 = vunpack.c.l.b16 %v107
    %v148 = vunpack.c.h.b16 %v107
    %v149 = vunpack.c.l.b16 %v108
    %v150 = vunpack.c.h.b16 %v108
    %v151 = vunpack.c.l.b16 %v109
    %v152 = vunpack.c.h.b16 %v109
    %v153 = vunpack.c.l.b16 %v110
    %v154 = vunpack.c.h.b16 %v110
    %v155 = vunpack.c.l.b16 %v111
    %v156 = vunpack.c.h.b16 %v111
    %v157 = vunpack.c.l.b16 %v112
    %v158 = vunpack.c.h.b16 %v112
    %v159 = vpack.c.b16 %v147, %v143
    %v160 = vpack.c.b16 %v148, %v144
    %v161 = vpack.c.b16 %v149, %v145
    %v162 = vpack.c.b16 %v150, %v146
    %v163 = vpack.c.b16 %v155, %v151
    %v164 = vpack.c.b16 %v156, %v152
    %v165 = vpack.c.b16 %v157, %v153
    %v166 = vpack.c.b16 %v158, %v154
    %vm175 = vcmask 261120
    %v177 = vsel %vm175, %v101, 0
    %v180 = vsel %vm175, %v102, 0
    %v183 = vsel %vm175, %v103, 0
    %v186 = vsel %vm175, %v104, 0
    %188 = vmatprep.subr.bf16.mxu0 %v160
    %189 = vmatpush1.bf16.msra.mxu0 %v159
    %190 = vmatprep.subr.bf16.mxu0 %v164
    %191 = vmatpush1.bf16.msra.mxu0 %v163
    %192 = vmatprep.subr.bf16.mxu0 0
    %193 = vmatpush1.bf16.msra.mxu0 0
    %194 = vmatprep.subr.bf16.mxu0 0
    %195 = vmatpush1.bf16.msra.mxu0 0
    %196 = vmatprep.subr.bf16.mxu0 0
    %197 = vmatpush1.bf16.msra.mxu0 0
    %198 = vmatprep.subr.bf16.mxu0 0
    %199 = vmatpush1.bf16.msra.mxu0 0
    %200 = vmatprep.subr.bf16.mxu0 0
    %201 = vmatpush1.bf16.msra.mxu0 0
    %202 = vmatprep.subr.bf16.mxu0 0
    %203 = vmatpush1.bf16.msra.mxu0 0
    %204 = vmatprep.subr.bf16.mxu0 0
    %205 = vmatpush1.bf16.msra.mxu0 0
    %206 = vmatprep.subr.bf16.mxu0 0
    %207 = vmatpush1.bf16.msra.mxu0 0
    %208 = vmatprep.subr.bf16.mxu0 0
    %209 = vmatpush1.bf16.msra.mxu0 0
    %210 = vmatprep.subr.bf16.mxu0 0
    %211 = vmatpush1.bf16.msra.mxu0 0
    %212 = vmatprep.subr.bf16.mxu0 0
    %213 = vmatpush1.bf16.msra.mxu0 0
    %214 = vmatprep.subr.bf16.mxu0 0
    %215 = vmatpush1.bf16.msra.mxu0 0
    %216 = vmatprep.subr.bf16.mxu0 0
    %217 = vmatpush1.bf16.msra.mxu0 0
    %218 = vmatprep.subr.bf16.mxu0 0
    %219 = vmatpush1.bf16.msra.mxu0 0
    %220 = vmatprep.mubr.bf16.mxu0 0
    %221 = vmatmul.mubr.bf16.gmra.mrb[0].mxu0 %v177
    %v222 = vpop.f32.mrb[0].mxu0
    %v223 = vadd.f32 %v118, %v222
    %v224 = vpop.f32.mrb[0].mxu0
    %v225 = vadd.f32 %v122, %v224
    %v226 = vpop.f32.mrb[0].mxu0
    %v227 = vadd.f32 %v118, %v226
    %v228 = vpop.f32.mrb[0].mxu0
    %v229 = vadd.f32 %v122, %v228
    %230 = vmatprep.mubr.bf16.mxu0 0
    %231 = vmatmul.mubr.bf16.gmra.mrb[0].mxu0 %v180
    %v232 = vpop.f32.mrb[0].mxu0
    %v233 = vadd.f32 %v118, %v232
    %v234 = vpop.f32.mrb[0].mxu0
    %v235 = vadd.f32 %v122, %v234
    %v236 = vpop.f32.mrb[0].mxu0
    %v237 = vadd.f32 %v118, %v236
    %v238 = vpop.f32.mrb[0].mxu0
    %v239 = vadd.f32 %v122, %v238
    %240 = vmatprep.mubr.bf16.mxu0 0
    %241 = vmatmul.mubr.bf16.gmra.mrb[0].mxu0 %v183
    %v242 = vpop.f32.mrb[0].mxu0
    %v243 = vadd.f32 %v118, %v242
    %v244 = vpop.f32.mrb[0].mxu0
    %v245 = vadd.f32 %v122, %v244
    %v246 = vpop.f32.mrb[0].mxu0
    %v247 = vadd.f32 %v118, %v246
    %v248 = vpop.f32.mrb[0].mxu0
    %v249 = vadd.f32 %v122, %v248
    %250 = vmatprep.mubr.bf16.mxu0 0
    %251 = vmatmul.mubr.bf16.gmra.mrb[0].mxu0 %v186
    %v252 = vpop.f32.mrb[0].mxu0
    %v253 = vadd.f32 %v118, %v252
    %v254 = vpop.f32.mrb[0].mxu0
    %v255 = vadd.f32 %v122, %v254
    %v256 = vpop.f32.mrb[0].mxu0
    %v257 = vadd.f32 %v118, %v256
    %v258 = vpop.f32.mrb[0].mxu0
    %v259 = vadd.f32 %v122, %v258
    %260 = vdwg.mxu0
    %261 = vmatprep.subr.bf16.mxu0 %v162
    %262 = vmatpush1.bf16.msra.mxu0 %v161
    %263 = vmatprep.subr.bf16.mxu0 %v166
    %264 = vmatpush1.bf16.msra.mxu0 %v165
    %265 = vmatprep.subr.bf16.mxu0 0
    %266 = vmatpush1.bf16.msra.mxu0 0
    %267 = vmatprep.subr.bf16.mxu0 0
    %268 = vmatpush1.bf16.msra.mxu0 0
    %269 = vmatprep.subr.bf16.mxu0 0
    %270 = vmatpush1.bf16.msra.mxu0 0
    %271 = vmatprep.subr.bf16.mxu0 0
    %272 = vmatpush1.bf16.msra.mxu0 0
    %273 = vmatprep.subr.bf16.mxu0 0
    %274 = vmatpush1.bf16.msra.mxu0 0
    %275 = vmatprep.subr.bf16.mxu0 0
    %276 = vmatpush1.bf16.msra.mxu0 0
    %277 = vmatprep.subr.bf16.mxu0 0
    %278 = vmatpush1.bf16.msra.mxu0 0
    %279 = vmatprep.subr.bf16.mxu0 0
    %280 = vmatpush1.bf16.msra.mxu0 0
    %281 = vmatprep.subr.bf16.mxu0 0
    %282 = vmatpush1.bf16.msra.mxu0 0
    %283 = vmatprep.subr.bf16.mxu0 0
    %284 = vmatpush1.bf16.msra.mxu0 0
    %285 = vmatprep.subr.bf16.mxu0 0
    %286 = vmatpush1.bf16.msra.mxu0 0
    %287 = vmatprep.subr.bf16.mxu0 0
    %288 = vmatpush1.bf16.msra.mxu0 0
    %289 = vmatprep.subr.bf16.mxu0 0
    %290 = vmatpush1.bf16.msra.mxu0 0
    %291 = vmatprep.subr.bf16.mxu0 0
    %292 = vmatpush1.bf16.msra.mxu0 0
    %293 = vmatprep.mubr.bf16.mxu0 0
    %294 = vmatmul.mubr.bf16.gmra.mrb[0].mxu0 %v177
    %v295 = vpop.f32.mrb[0].mxu0
    %v296 = vadd.f32 %v126, %v295
    %v297 = vpop.f32.mrb[0].mxu0
    %v298 = vadd.f32 %v130, %v297
    %v299 = vpop.f32.mrb[0].mxu0
    %v300 = vadd.f32 %v126, %v299
    %v301 = vpop.f32.mrb[0].mxu0
    %v302 = vadd.f32 %v130, %v301
    %303 = vmatprep.mubr.bf16.mxu0 0
    %304 = vmatmul.mubr.bf16.gmra.mrb[0].mxu0 %v180
    %v305 = vpop.f32.mrb[0].mxu0
    %v306 = vadd.f32 %v126, %v305
    %v307 = vpop.f32.mrb[0].mxu0
    %v308 = vadd.f32 %v130, %v307
    %v309 = vpop.f32.mrb[0].mxu0
    %v310 = vadd.f32 %v126, %v309
    %v311 = vpop.f32.mrb[0].mxu0
    %v312 = vadd.f32 %v130, %v311
    %313 = vmatprep.mubr.bf16.mxu0 0
    %314 = vmatmul.mubr.bf16.gmra.mrb[0].mxu0 %v183
    %v315 = vpop.f32.mrb[0].mxu0
    %v316 = vadd.f32 %v126, %v315
    %v317 = vpop.f32.mrb[0].mxu0
    %v318 = vadd.f32 %v130, %v317
    %v319 = vpop.f32.mrb[0].mxu0
    %v320 = vadd.f32 %v126, %v319
    %v321 = vpop.f32.mrb[0].mxu0
    %v322 = vadd.f32 %v130, %v321
    %323 = vmatprep.mubr.bf16.mxu0 0
    %324 = vmatmul.mubr.bf16.gmra.mrb[0].mxu0 %v186
    %v325 = vpop.f32.mrb[0].mxu0
    %v326 = vadd.f32 %v126, %v325
    %v327 = vpop.f32.mrb[0].mxu0
    %v328 = vadd.f32 %v130, %v327
    %v329 = vpop.f32.mrb[0].mxu0
    %v330 = vadd.f32 %v126, %v329
    %v331 = vpop.f32.mrb[0].mxu0
    %v332 = vadd.f32 %v130, %v331
    %333 = vdwg.mxu0
    %334 = vst [vmem:[#allocation5] sm:$0xff] %v223
    %335 = vst [vmem:[#allocation5 + $0x8] sm:$0xff] %v225
    %336 = vst [vmem:[#allocation5 + $0x10] sm:$0xff] %v296
    %337 = vst [vmem:[#allocation5 + $0x18] sm:$0xff] %v298
    %338 = vst [vmem:[#allocation5 + $0x20] sm:$0xff] %v227
    %339 = vst [vmem:[#allocation5 + $0x28] sm:$0xff] %v229
    %340 = vst [vmem:[#allocation5 + $0x30] sm:$0xff] %v300
    %341 = vst [vmem:[#allocation5 + $0x38] sm:$0xff] %v302
    %342 = vst [vmem:[#allocation5 + $0x40] sm:$0xff] %v233
    %343 = vst [vmem:[#allocation5 + $0x48] sm:$0xff] %v235
    %344 = vst [vmem:[#allocation5 + $0x50] sm:$0xff] %v306
    %345 = vst [vmem:[#allocation5 + $0x58] sm:$0xff] %v308
    %346 = vst [vmem:[#allocation5 + $0x60] sm:$0xff] %v237
    %347 = vst [vmem:[#allocation5 + $0x68] sm:$0xff] %v239
    %348 = vst [vmem:[#allocation5 + $0x70] sm:$0xff] %v310
    %349 = vst [vmem:[#allocation5 + $0x78] sm:$0xff] %v312
    %350 = vst [vmem:[#allocation5 + $0x80] sm:$0xff] %v243
    %351 = vst [vmem:[#allocation5 + $0x88] sm:$0xff] %v245
    %352 = vst [vmem:[#allocation5 + $0x90] sm:$0xff] %v316
    %353 = vst [vmem:[#allocation5 + $0x98] sm:$0xff] %v318
    %354 = vst [vmem:[#allocation5 + $0xa0] sm:$0xff] %v247
    %355 = vst [vmem:[#allocation5 + $0xa8] sm:$0xff] %v249
    %356 = vst [vmem:[#allocation5 + $0xb0] sm:$0xff] %v320
    %357 = vst [vmem:[#allocation5 + $0xb8] sm:$0xff] %v322
    %358 = vst [vmem:[#allocation5 + $0xc0] sm:$0xff] %v253
    %359 = vst [vmem:[#allocation5 + $0xc8] sm:$0xff] %v255
    %360 = vst [vmem:[#allocation5 + $0xd0] sm:$0xff] %v326
    %361 = vst [vmem:[#allocation5 + $0xd8] sm:$0xff] %v328
    %362 = vst [vmem:[#allocation5 + $0xe0] sm:$0xff] %v257
    %363 = vst [vmem:[#allocation5 + $0xe8] sm:$0xff] %v259
    %364 = vst [vmem:[#allocation5 + $0xf0] sm:$0xff] %v330
    %365 = vst [vmem:[#allocation5 + $0xf8] sm:$0xff] %v332
    %v366 = vld [vmem:[#allocation11] sm:$0xff]
    %v367 = vld [vmem:[#allocation11 + $0x8] sm:$0xff]
    %v368 = vld [vmem:[#allocation11 + $0x10] sm:$0xff]
    %v369 = vld [vmem:[#allocation11 + $0x18] sm:$0xff]
    %v370 = vld [vmem:[#allocation11 + $0x20] sm:$0xff]
    %v371 = vld [vmem:[#allocation11 + $0x28] sm:$0xff]
    %v372 = vld [vmem:[#allocation11 + $0x30] sm:$0xff]
    %v373 = vld [vmem:[#allocation11 + $0x38] sm:$0xff]
    %v374 = vld [vmem:[#allocation11 + $0x40] sm:$0xff]
    %v375 = vld [vmem:[#allocation11 + $0x48] sm:$0xff]
    %v376 = vld [vmem:[#allocation11 + $0x50] sm:$0xff]
    %v377 = vld [vmem:[#allocation11 + $0x58] sm:$0xff]
    %v378 = vld [vmem:[#allocation11 + $0x60] sm:$0xff]
    %v379 = vld [vmem:[#allocation11 + $0x68] sm:$0xff]
    %v380 = vld [vmem:[#allocation11 + $0x70] sm:$0xff]
    %v381 = vld [vmem:[#allocation11 + $0x78] sm:$0xff]
    %v382 = vld [vmem:[#allocation11 + $0x80] sm:$0xff]
    %v383 = vld [vmem:[#allocation11 + $0x88] sm:$0xff]
    %v384 = vld [vmem:[#allocation11 + $0x90] sm:$0xff]
    %v385 = vld [vmem:[#allocation11 + $0x98] sm:$0xff]
    %v386 = vld [vmem:[#allocation11 + $0xa0] sm:$0xff]
    %v387 = vld [vmem:[#allocation11 + $0xa8] sm:$0xff]
    %v388 = vld [vmem:[#allocation11 + $0xb0] sm:$0xff]
    %v389 = vld [vmem:[#allocation11 + $0xb8] sm:$0xff]
    %v390 = vld [vmem:[#allocation11 + $0xc0] sm:$0xff]
    %v391 = vld [vmem:[#allocation11 + $0xc8] sm:$0xff]
    %v392 = vld [vmem:[#allocation11 + $0xd0] sm:$0xff]
    %v393 = vld [vmem:[#allocation11 + $0xd8] sm:$0xff]
    %v394 = vld [vmem:[#allocation11 + $0xe0] sm:$0xff]
    %v395 = vld [vmem:[#allocation11 + $0xe8] sm:$0xff]
    %v396 = vld [vmem:[#allocation11 + $0xf0] sm:$0xff]
    %v397 = vld [vmem:[#allocation11 + $0xf8] sm:$0xff]
    %v398 = vld [vmem:[%s1] sm:$0xff]
    %s399 = smul.u32 0, 8
    %v400 = vld [vmem:[#allocation2] sm:$0xff]
    %v401 = vpack.c.bf16 %v400, %v400
    %v434 = vunpack.c.l.b16 %v366
    %v435 = vunpack.c.h.b16 %v366
    %v436 = vunpack.c.l.b16 %v367
    %v437 = vunpack.c.h.b16 %v367
    %v438 = vunpack.c.l.b16 %v368
    %v439 = vunpack.c.h.b16 %v368
    %v440 = vunpack.c.l.b16 %v369
    %v441 = vunpack.c.h.b16 %v369
    %v442 = vunpack.c.l.b16 %v370
    %v443 = vunpack.c.h.b16 %v370
    %v444 = vunpack.c.l.b16 %v371
    %v445 = vunpack.c.h.b16 %v371
    %v446 = vunpack.c.l.b16 %v372
    %v447 = vunpack.c.h.b16 %v372
    %v448 = vunpack.c.l.b16 %v373
    %v449 = vunpack.c.h.b16 %v373
    %v450 = vunpack.c.l.b16 %v374
    %v451 = vunpack.c.h.b16 %v374
    %v452 = vunpack.c.l.b16 %v375
    %v453 = vunpack.c.h.b16 %v375
    %v454 = vunpack.c.l.b16 %v376
    %v455 = vunpack.c.h.b16 %v376
    %v456 = vunpack.c.l.b16 %v377
    %v457 = vunpack.c.h.b16 %v377
    %v458 = vunpack.c.l.b16 %v378
    %v459 = vunpack.c.h.b16 %v378
    %v460 = vunpack.c.l.b16 %v379
    %v461 = vunpack.c.h.b16 %v379
    %v462 = vunpack.c.l.b16 %v380
    %v463 = vunpack.c.h.b16 %v380
    %v464 = vunpack.c.l.b16 %v381
    %v465 = vunpack.c.h.b16 %v381
    %v466 = vunpack.c.l.b16 %v382
    %v467 = vunpack.c.h.b16 %v382
    %v468 = vunpack.c.l.b16 %v383
    %v469 = vunpack.c.h.b16 %v383
    %v470 = vunpack.c.l.b16 %v384
    %v471 = vunpack.c.h.b16 %v384
    %v472 = vunpack.c.l.b16 %v385
    %v473 = vunpack.c.h.b16 %v385
    %v474 = vunpack.c.l.b16 %v386
    %v475 = vunpack.c.h.b16 %v386
    %v476 = vunpack.c.l.b16 %v387
    %v477 = vunpack.c.h.b16 %v387
    %v478 = vunpack.c.l.b16 %v388
    %v479 = vunpack.c.h.b16 %v388
    %v480 = vunpack.c.l.b16 %v389
    %v481 = vunpack.c.h.b16 %v389
    %v482 = vunpack.c.l.b16 %v390
    %v483 = vunpack.c.h.b16 %v390
    %v484 = vunpack.c.l.b16 %v391
    %v485 = vunpack.c.h.b16 %v391
    %v486 = vunpack.c.l.b16 %v392
    %v487 = vunpack.c.h.b16 %v392
    %v488 = vunpack.c.l.b16 %v393
    %v489 = vunpack.c.h.b16 %v393
    %v490 = vunpack.c.l.b16 %v394
    %v491 = vunpack.c.h.b16 %v394
    %v492 = vunpack.c.l.b16 %v395
    %v493 = vunpack.c.h.b16 %v395
    %v494 = vunpack.c.l.b16 %v396
    %v495 = vunpack.c.h.b16 %v396
    %v496 = vunpack.c.l.b16 %v397
    %v497 = vunpack.c.h.b16 %v397
    %v498 = vpack.c.b16 %v438, %v434
    %v499 = vpack.c.b16 %v439, %v435
    %v500 = vpack.c.b16 %v440, %v436
    %v501 = vpack.c.b16 %v441, %v437
    %v502 = vpack.c.b16 %v446, %v442
    %v503 = vpack.c.b16 %v447, %v443
    %v504 = vpack.c.b16 %v448, %v444
    %v505 = vpack.c.b16 %v449, %v445
    %v506 = vpack.c.b16 %v454, %v450
    %v507 = vpack.c.b16 %v455, %v451
    %v508 = vpack.c.b16 %v456, %v452
    %v509 = vpack.c.b16 %v457, %v453
    %v510 = vpack.c.b16 %v462, %v458
    %v511 = vpack.c.b16 %v463, %v459
    %v512 = vpack.c.b16 %v464, %v460
    %v513 = vpack.c.b16 %v465, %v461
    %v514 = vpack.c.b16 %v470, %v466
    %v515 = vpack.c.b16 %v471, %v467
    %v516 = vpack.c.b16 %v472, %v468
    %v517 = vpack.c.b16 %v473, %v469
    %v518 = vpack.c.b16 %v478, %v474
    %v519 = vpack.c.b16 %v479, %v475
    %v520 = vpack.c.b16 %v480, %v476
    %v521 = vpack.c.b16 %v481, %v477
    %v522 = vpack.c.b16 %v486, %v482
    %v523 = vpack.c.b16 %v487, %v483
    %v524 = vpack.c.b16 %v488, %v484
    %v525 = vpack.c.b16 %v489, %v485
    %v526 = vpack.c.b16 %v494, %v490
    %v527 = vpack.c.b16 %v495, %v491
    %v528 = vpack.c.b16 %v496, %v492
    %v529 = vpack.c.b16 %v497, %v493
    %562 = vmatprep.subr.bf16.mxu0 %v499
    %563 = vmatpush1.bf16.msra.mxu0 %v498
    %564 = vmatprep.subr.bf16.mxu0 %v503
    %565 = vmatpush1.bf16.msra.mxu0 %v502
    %566 = vmatprep.subr.bf16.mxu0 %v507
    %567 = vmatpush1.bf16.msra.mxu0 %v506
    %568 = vmatprep.subr.bf16.mxu0 %v511
    %569 = vmatpush1.bf16.msra.mxu0 %v510
    %570 = vmatprep.subr.bf16.mxu0 %v515
    %571 = vmatpush1.bf16.msra.mxu0 %v514
    %572 = vmatprep.subr.bf16.mxu0 %v519
    %573 = vmatpush1.bf16.msra.mxu0 %v518
    %574 = vmatprep.subr.bf16.mxu0 %v523
    %575 = vmatpush1.bf16.msra.mxu0 %v522
    %576 = vmatprep.subr.bf16.mxu0 %v527
    %577 = vmatpush1.bf16.msra.mxu0 %v526
    %578 = vmatprep.subr.bf16.mxu0 0
    %579 = vmatpush1.bf16.msra.mxu0 0
    %580 = vmatprep.subr.bf16.mxu0 0
    %581 = vmatpush1.bf16.msra.mxu0 0
    %582 = vmatprep.subr.bf16.mxu0 0
    %583 = vmatpush1.bf16.msra.mxu0 0
    %584 = vmatprep.subr.bf16.mxu0 0
    %585 = vmatpush1.bf16.msra.mxu0 0
    %586 = vmatprep.subr.bf16.mxu0 0
    %587 = vmatpush1.bf16.msra.mxu0 0
    %588 = vmatprep.subr.bf16.mxu0 0
    %589 = vmatpush1.bf16.msra.mxu0 0
    %590 = vmatprep.subr.bf16.mxu0 0
    %591 = vmatpush1.bf16.msra.mxu0 0
    %592 = vmatprep.subr.bf16.mxu0 0
    %593 = vmatpush1.bf16.msra.mxu0 0
    %594 = vmatprep.mubr.bf16.mxu0 0
    %595 = vmatmul.mubr.bf16.gmra.mrb[0].mxu0 %v401
    %v596 = vpop.f32.mrb[0].mxu0
    %v597 = vadd.f32 0.0, %v596
    %v598 = vpop.f32.mrb[0].mxu0
    %v599 = vadd.f32 0.0, %v598
    %v600 = vpop.f32.mrb[0].mxu0
    %v601 = vpop.f32.mrb[0].mxu0
    %602 = vdwg.mxu0
    %603 = vmatprep.subr.bf16.mxu0 %v501
    %604 = vmatpush1.bf16.msra.mxu0 %v500
    %605 = vmatprep.subr.bf16.mxu0 %v505
    %606 = vmatpush1.bf16.msra.mxu0 %v504
    %607 = vmatprep.subr.bf16.mxu0 %v509
    %608 = vmatpush1.bf16.msra.mxu0 %v508
    %609 = vmatprep.subr.bf16.mxu0 %v513
    %610 = vmatpush1.bf16.msra.mxu0 %v512
    %611 = vmatprep.subr.bf16.mxu0 %v517
    %612 = vmatpush1.bf16.msra.mxu0 %v516
    %613 = vmatprep.subr.bf16.mxu0 %v521
    %614 = vmatpush1.bf16.msra.mxu0 %v520
    %615 = vmatprep.subr.bf16.mxu0 %v525
    %616 = vmatpush1.bf16.msra.mxu0 %v524
    %617 = vmatprep.subr.bf16.mxu0 %v529
    %618 = vmatpush1.bf16.msra.mxu0 %v528
    %619 = vmatprep.subr.bf16.mxu0 0
    %620 = vmatpush1.bf16.msra.mxu0 0
    %621 = vmatprep.subr.bf16.mxu0 0
    %622 = vmatpush1.bf16.msra.mxu0 0
    %623 = vmatprep.subr.bf16.mxu0 0
    %624 = vmatpush1.bf16.msra.mxu0 0
    %625 = vmatprep.subr.bf16.mxu0 0
    %626 = vmatpush1.bf16.msra.mxu0 0
    %627 = vmatprep.subr.bf16.mxu0 0
    %628 = vmatpush1.bf16.msra.mxu0 0
    %629 = vmatprep.subr.bf16.mxu0 0
    %630 = vmatpush1.bf16.msra.mxu0 0
    %631 = vmatprep.subr.bf16.mxu0 0
    %632 = vmatpush1.bf16.msra.mxu0 0
    %633 = vmatprep.subr.bf16.mxu0 0
    %634 = vmatpush1.bf16.msra.mxu0 0
    %635 = vmatprep.mubr.bf16.mxu0 0
    %636 = vmatmul.mubr.bf16.gmra.mrb[0].mxu0 %v401
    %v637 = vpop.f32.mrb[0].mxu0
    %v638 = vadd.f32 0.0, %v637
    %v639 = vpop.f32.mrb[0].mxu0
    %v640 = vadd.f32 0.0, %v639
    %v641 = vpop.f32.mrb[0].mxu0
    %v642 = vpop.f32.mrb[0].mxu0
    %643 = vdwg.mxu0
    %v644 = vld [vmem:[#allocation5] sm:$0xff]
    %v645 = vld [vmem:[#allocation5 + $0x8] sm:$0xff]
    %v646 = vld [vmem:[#allocation5 + $0x10] sm:$0xff]
    %v647 = vld [vmem:[#allocation5 + $0x18] sm:$0xff]
    %v648 = vadd.f32 %v644, %v597
    %v649 = vadd.f32 %v645, %v599
    %v650 = vadd.f32 %v646, %v638
    %v651 = vadd.f32 %v647, %v640
    %v652 = vxor.u32 %v648, 2147483648
    %v653 = vxor.u32 %v649, 2147483648
    %v654 = vxor.u32 %v650, 2147483648
    %v655 = vmul.f32 %v652, 1.442695
    %v656 = vpow.pop %v655
    %v657 = vmul.f32 %v653, 1.442695
    %v658 = vpow.pop %v657
    %v659 = vmul.f32 %v654, 1.442695
    %v660 = vpow.pop %v659
    %v661 = vadd.f32 %v656, 1.0
    %v662 = vadd.f32 %v658, 1.0
    %v663 = vadd.f32 %v660, 1.0
    %v664 = vrcp.pop %v661
    %v665 = vmul.f32 1.0, %v664
    %v666 = vrcp.pop %v662
    %v667 = vmul.f32 1.0, %v666
    %v668 = vrcp.pop %v663
    %v669 = vmul.f32 1.0, %v668
    %v670 = vtanh.pop %v651
    %v671 = vld [vmem:[#allocation3] sm:$0xff]
    %v672 = vmul.f32 %v667, %v671
    %v673 = vmul.f32 %v665, %v670
    %v674 = vadd.f32 %v672, %v673
    %v675 = vtanh.pop %v674
    %v676 = vmul.f32 %v669, %v675
    %677 = vst [vmem:[#allocation3] sm:$0xff] %v674
    %678 = vst [vmem:[#allocation2] sm:$0xff] %v676
    %679 = vst [vmem:[#allocation14] sm:$0xff] %v676
    %v680 = vstv %s399
    %vm681 = vcmp.eq.s32.totalorder %v398, %v680
    %v682 = vld [vmem:[#allocation4] sm:$0xff]
    %v683 = vsel %vm681, 1, 0
    %684 = vset.pattern.permute.xlu0 0
    %685 = vperm.xlu0 %684, %v683
    %v686 = vpop.permute.xlu0 %685
    %vm687 = vcmp.eq.s32.totalorder %v686, 1
    %v688 = vsel %vm687, %v676, %v682
    %689 = vst [vmem:[#allocation4] sm:$0xff] %v688
    %v690 = vld [vmem:[#allocation2] sm:$0xff]
    %v691 = vpack.c.bf16 %v690, %v690
    %692 = vmatprep.subr.bf16.mxu0 %v499
    %693 = vmatpush1.bf16.msra.mxu0 %v498
    %694 = vmatprep.subr.bf16.mxu0 %v503
    %695 = vmatpush1.bf16.msra.mxu0 %v502
    %696 = vmatprep.subr.bf16.mxu0 %v507
    %697 = vmatpush1.bf16.msra.mxu0 %v506
    %698 = vmatprep.subr.bf16.mxu0 %v511
    %699 = vmatpush1.bf16.msra.mxu0 %v510
    %700 = vmatprep.subr.bf16.mxu0 %v515
    %701 = vmatpush1.bf16.msra.mxu0 %v514
    %702 = vmatprep.subr.bf16.mxu0 %v519
    %703 = vmatpush1.bf16.msra.mxu0 %v518
    %704 = vmatprep.subr.bf16.mxu0 %v523
    %705 = vmatpush1.bf16.msra.mxu0 %v522
    %706 = vmatprep.subr.bf16.mxu0 %v527
    %707 = vmatpush1.bf16.msra.mxu0 %v526
    %708 = vmatprep.subr.bf16.mxu0 0
    %709 = vmatpush1.bf16.msra.mxu0 0
    %710 = vmatprep.subr.bf16.mxu0 0
    %711 = vmatpush1.bf16.msra.mxu0 0
    %712 = vmatprep.subr.bf16.mxu0 0
    %713 = vmatpush1.bf16.msra.mxu0 0
    %714 = vmatprep.subr.bf16.mxu0 0
    %715 = vmatpush1.bf16.msra.mxu0 0
    %716 = vmatprep.subr.bf16.mxu0 0
    %717 = vmatpush1.bf16.msra.mxu0 0
    %718 = vmatprep.subr.bf16.mxu0 0
    %719 = vmatpush1.bf16.msra.mxu0 0
    %720 = vmatprep.subr.bf16.mxu0 0
    %721 = vmatpush1.bf16.msra.mxu0 0
    %722 = vmatprep.subr.bf16.mxu0 0
    %723 = vmatpush1.bf16.msra.mxu0 0
    %724 = vmatprep.mubr.bf16.mxu0 0
    %725 = vmatmul.mubr.bf16.gmra.mrb[0].mxu0 %v691
    %v726 = vpop.f32.mrb[0].mxu0
    %v727 = vadd.f32 0.0, %v726
    %v728 = vpop.f32.mrb[0].mxu0
    %v729 = vadd.f32 0.0, %v728
    %v730 = vpop.f32.mrb[0].mxu0
    %v731 = vpop.f32.mrb[0].mxu0
    %732 = vdwg.mxu0
    %733 = vmatprep.subr.bf16.mxu0 %v501
    %734 = vmatpush1.bf16.msra.mxu0 %v500
    %735 = vmatprep.subr.bf16.mxu0 %v505
    %736 = vmatpush1.bf16.msra.mxu0 %v504
    %737 = vmatprep.subr.bf16.mxu0 %v509
    %738 = vmatpush1.bf16.msra.mxu0 %v508
    %739 = vmatprep.subr.bf16.mxu0 %v513
    %740 = vmatpush1.bf16.msra.mxu0 %v512
    %741 = vmatprep.subr.bf16.mxu0 %v517
    %742 = vmatpush1.bf16.msra.mxu0 %v516
    %743 = vmatprep.subr.bf16.mxu0 %v521
    %744 = vmatpush1.bf16.msra.mxu0 %v520
    %745 = vmatprep.subr.bf16.mxu0 %v525
    %746 = vmatpush1.bf16.msra.mxu0 %v524
    %747 = vmatprep.subr.bf16.mxu0 %v529
    %748 = vmatpush1.bf16.msra.mxu0 %v528
    %749 = vmatprep.subr.bf16.mxu0 0
    %750 = vmatpush1.bf16.msra.mxu0 0
    %751 = vmatprep.subr.bf16.mxu0 0
    %752 = vmatpush1.bf16.msra.mxu0 0
    %753 = vmatprep.subr.bf16.mxu0 0
    %754 = vmatpush1.bf16.msra.mxu0 0
    %755 = vmatprep.subr.bf16.mxu0 0
    %756 = vmatpush1.bf16.msra.mxu0 0
    %757 = vmatprep.subr.bf16.mxu0 0
    %758 = vmatpush1.bf16.msra.mxu0 0
    %759 = vmatprep.subr.bf16.mxu0 0
    %760 = vmatpush1.bf16.msra.mxu0 0
    %761 = vmatprep.subr.bf16.mxu0 0
    %762 = vmatpush1.bf16.msra.mxu0 0
    %763 = vmatprep.subr.bf16.mxu0 0
    %764 = vmatpush1.bf16.msra.mxu0 0
    %765 = vmatprep.mubr.bf16.mxu0 0
    %766 = vmatmul.mubr.bf16.gmra.mrb[0].mxu0 %v691
    %v767 = vpop.f32.mrb[0].mxu0
    %v768 = vadd.f32 0.0, %v767
    %v769 = vpop.f32.mrb[0].mxu0
    %v770 = vadd.f32 0.0, %v769
    %v771 = vpop.f32.mrb[0].mxu0
    %v772 = vpop.f32.mrb[0].mxu0
    %773 = vdwg.mxu0
    %s774 = scalar_lea.vmem [#allocation5], 32
    %v775 = vld [vmem:[%s774] sm:$0xff]
    %v776 = vld [vmem:[%s774 + $0x8] sm:$0xff]
    %v777 = vld [vmem:[%s774 + $0x10] sm:$0xff]
    %v778 = vld [vmem:[%s774 + $0x18] sm:$0xff]
    %v779 = vadd.f32 %v775, %v727
    %v780 = vadd.f32 %v776, %v729
    %v781 = vadd.f32 %v777, %v768
    %v782 = vadd.f32 %v778, %v770
    %v783 = vxor.u32 %v779, 2147483648
    %v784 = vxor.u32 %v780, 2147483648
    %v785 = vxor.u32 %v781, 2147483648
    %v786 = vmul.f32 %v783, 1.442695
    %v787 = vpow.pop %v786
    %v788 = vmul.f32 %v784, 1.442695
    %v789 = vpow.pop %v788
    %v790 = vmul.f32 %v785, 1.442695
    %v791 = vpow.pop %v790
    %v792 = vadd.f32 %v787, 1.0
    %v793 = vadd.f32 %v789, 1.0
    %v794 = vadd.f32 %v791, 1.0
    %v795 = vrcp.pop %v792
    %v796 = vmul.f32 1.0, %v795
    %v797 = vrcp.pop %v793
    %v798 = vmul.f32 1.0, %v797
    %v799 = vrcp.pop %v794
    %v800 = vmul.f32 1.0, %v799
    %v801 = vtanh.pop %v782
    %v802 = vld [vmem:[#allocation3] sm:$0xff]
    %v803 = vmul.f32 %v798, %v802
    %v804 = vmul.f32 %v796, %v801
    %v805 = vadd.f32 %v803, %v804
    %v806 = vtanh.pop %v805
    %v807 = vmul.f32 %v800, %v806
    %808 = vst [vmem:[#allocation3] sm:$0xff] %v805
    %809 = vst [vmem:[#allocation2] sm:$0xff] %v807
    %s810 = scalar_lea.vmem [#allocation14], 8
    %811 = vst [vmem:[%s810] sm:$0xff] %v807
    %s812 = sadd.s32 %s399, 1
    %v813 = vstv %s812
    %vm814 = vcmp.eq.s32.totalorder %v398, %v813
    %v815 = vld [vmem:[#allocation4] sm:$0xff]
    %v816 = vsel %vm814, 1, 0
    %817 = vset.pattern.permute.xlu0 0
    %818 = vperm.xlu0 %817, %v816
    %v819 = vpop.permute.xlu0 %818
    %vm820 = vcmp.eq.s32.totalorder %v819, 1
    %v821 = vsel %vm820, %v807, %v815
    %822 = vst [vmem:[#allocation4] sm:$0xff] %v821
    %v823 = vld [vmem:[#allocation2] sm:$0xff]
    %v824 = vpack.c.bf16 %v823, %v823
    %825 = vmatprep.subr.bf16.mxu0 %v499
    %826 = vmatpush1.bf16.msra.mxu0 %v498
    %827 = vmatprep.subr.bf16.mxu0 %v503
    %828 = vmatpush1.bf16.msra.mxu0 %v502
    %829 = vmatprep.subr.bf16.mxu0 %v507
    %830 = vmatpush1.bf16.msra.mxu0 %v506
    %831 = vmatprep.subr.bf16.mxu0 %v511
    %832 = vmatpush1.bf16.msra.mxu0 %v510
    %833 = vmatprep.subr.bf16.mxu0 %v515
    %834 = vmatpush1.bf16.msra.mxu0 %v514
    %835 = vmatprep.subr.bf16.mxu0 %v519
    %836 = vmatpush1.bf16.msra.mxu0 %v518
    %837 = vmatprep.subr.bf16.mxu0 %v523
    %838 = vmatpush1.bf16.msra.mxu0 %v522
    %839 = vmatprep.subr.bf16.mxu0 %v527
    %840 = vmatpush1.bf16.msra.mxu0 %v526
    %841 = vmatprep.subr.bf16.mxu0 0
    %842 = vmatpush1.bf16.msra.mxu0 0
    %843 = vmatprep.subr.bf16.mxu0 0
    %844 = vmatpush1.bf16.msra.mxu0 0
    %845 = vmatprep.subr.bf16.mxu0 0
    %846 = vmatpush1.bf16.msra.mxu0 0
    %847 = vmatprep.subr.bf16.mxu0 0
    %848 = vmatpush1.bf16.msra.mxu0 0
    %849 = vmatprep.subr.bf16.mxu0 0
    %850 = vmatpush1.bf16.msra.mxu0 0
    %851 = vmatprep.subr.bf16.mxu0 0
    %852 = vmatpush1.bf16.msra.mxu0 0
    %853 = vmatprep.subr.bf16.mxu0 0
    %854 = vmatpush1.bf16.msra.mxu0 0
    %855 = vmatprep.subr.bf16.mxu0 0
    %856 = vmatpush1.bf16.msra.mxu0 0
    %857 = vmatprep.mubr.bf16.mxu0 0
    %858 = vmatmul.mubr.bf16.gmra.mrb[0].mxu0 %v824
    %v859 = vpop.f32.mrb[0].mxu0
    %v860 = vadd.f32 0.0, %v859
    %v861 = vpop.f32.mrb[0].mxu0
    %v862 = vadd.f32 0.0, %v861
    %v863 = vpop.f32.mrb[0].mxu0
    %v864 = vpop.f32.mrb[0].mxu0
    %865 = vdwg.mxu0
    %866 = vmatprep.subr.bf16.mxu0 %v501
    %867 = vmatpush1.bf16.msra.mxu0 %v500
    %868 = vmatprep.subr.bf16.mxu0 %v505
    %869 = vmatpush1.bf16.msra.mxu0 %v504
    %870 = vmatprep.subr.bf16.mxu0 %v509
    %871 = vmatpush1.bf16.msra.mxu0 %v508
    %872 = vmatprep.subr.bf16.mxu0 %v513
    %873 = vmatpush1.bf16.msra.mxu0 %v512
    %874 = vmatprep.subr.bf16.mxu0 %v517
    %875 = vmatpush1.bf16.msra.mxu0 %v516
    %876 = vmatprep.subr.bf16.mxu0 %v521
    %877 = vmatpush1.bf16.msra.mxu0 %v520
    %878 = vmatprep.subr.bf16.mxu0 %v525
    %879 = vmatpush1.bf16.msra.mxu0 %v524
    %880 = vmatprep.subr.bf16.mxu0 %v529
    %881 = vmatpush1.bf16.msra.mxu0 %v528
    %882 = vmatprep.subr.bf16.mxu0 0
    %883 = vmatpush1.bf16.msra.mxu0 0
    %884 = vmatprep.subr.bf16.mxu0 0
    %885 = vmatpush1.bf16.msra.mxu0 0
    %886 = vmatprep.subr.bf16.mxu0 0
    %887 = vmatpush1.bf16.msra.mxu0 0
    %888 = vmatprep.subr.bf16.mxu0 0
    %889 = vmatpush1.bf16.msra.mxu0 0
    %890 = vmatprep.subr.bf16.mxu0 0
    %891 = vmatpush1.bf16.msra.mxu0 0
    %892 = vmatprep.subr.bf16.mxu0 0
    %893 = vmatpush1.bf16.msra.mxu0 0
    %894 = vmatprep.subr.bf16.mxu0 0
    %895 = vmatpush1.bf16.msra.mxu0 0
    %896 = vmatprep.subr.bf16.mxu0 0
    %897 = vmatpush1.bf16.msra.mxu0 0
    %898 = vmatprep.mubr.bf16.mxu0 0
    %899 = vmatmul.mubr.bf16.gmra.mrb[0].mxu0 %v824
    %v900 = vpop.f32.mrb[0].mxu0
    %v901 = vadd.f32 0.0, %v900
    %v902 = vpop.f32.mrb[0].mxu0
    %v903 = vadd.f32 0.0, %v902
    %v904 = vpop.f32.mrb[0].mxu0
    %v905 = vpop.f32.mrb[0].mxu0
    %906 = vdwg.mxu0
    %s907 = scalar_lea.vmem [#allocation5], 64
    %v908 = vld [vmem:[%s907] sm:$0xff]
    %v909 = vld [vmem:[%s907 + $0x8] sm:$0xff]
    %v910 = vld [vmem:[%s907 + $0x10] sm:$0xff]
    %v911 = vld [vmem:[%s907 + $0x18] sm:$0xff]
    %v912 = vadd.f32 %v908, %v860
    %v913 = vadd.f32 %v909, %v862
    %v914 = vadd.f32 %v910, %v901
    %v915 = vadd.f32 %v911, %v903
    %v916 = vxor.u32 %v912, 2147483648
    %v917 = vxor.u32 %v913, 2147483648
    %v918 = vxor.u32 %v914, 2147483648
    %v919 = vmul.f32 %v916, 1.442695
    %v920 = vpow.pop %v919
    %v921 = vmul.f32 %v917, 1.442695
    %v922 = vpow.pop %v921
    %v923 = vmul.f32 %v918, 1.442695
    %v924 = vpow.pop %v923
    %v925 = vadd.f32 %v920, 1.0
    %v926 = vadd.f32 %v922, 1.0
    %v927 = vadd.f32 %v924, 1.0
    %v928 = vrcp.pop %v925
    %v929 = vmul.f32 1.0, %v928
    %v930 = vrcp.pop %v926
    %v931 = vmul.f32 1.0, %v930
    %v932 = vrcp.pop %v927
    %v933 = vmul.f32 1.0, %v932
    %v934 = vtanh.pop %v915
    %v935 = vld [vmem:[#allocation3] sm:$0xff]
    %v936 = vmul.f32 %v931, %v935
    %v937 = vmul.f32 %v929, %v934
    %v938 = vadd.f32 %v936, %v937
    %v939 = vtanh.pop %v938
    %v940 = vmul.f32 %v933, %v939
    %941 = vst [vmem:[#allocation3] sm:$0xff] %v938
    %942 = vst [vmem:[#allocation2] sm:$0xff] %v940
    %s943 = scalar_lea.vmem [#allocation14], 16
    %944 = vst [vmem:[%s943] sm:$0xff] %v940
    %s945 = sadd.s32 %s399, 2
    %v946 = vstv %s945
    %vm947 = vcmp.eq.s32.totalorder %v398, %v946
    %v948 = vld [vmem:[#allocation4] sm:$0xff]
    %v949 = vsel %vm947, 1, 0
    %950 = vset.pattern.permute.xlu0 0
    %951 = vperm.xlu0 %950, %v949
    %v952 = vpop.permute.xlu0 %951
    %vm953 = vcmp.eq.s32.totalorder %v952, 1
    %v954 = vsel %vm953, %v940, %v948
    %955 = vst [vmem:[#allocation4] sm:$0xff] %v954
    %v956 = vld [vmem:[#allocation2] sm:$0xff]
    %v957 = vpack.c.bf16 %v956, %v956
    %958 = vmatprep.subr.bf16.mxu0 %v499
    %959 = vmatpush1.bf16.msra.mxu0 %v498
    %960 = vmatprep.subr.bf16.mxu0 %v503
    %961 = vmatpush1.bf16.msra.mxu0 %v502
    %962 = vmatprep.subr.bf16.mxu0 %v507
    %963 = vmatpush1.bf16.msra.mxu0 %v506
    %964 = vmatprep.subr.bf16.mxu0 %v511
    %965 = vmatpush1.bf16.msra.mxu0 %v510
    %966 = vmatprep.subr.bf16.mxu0 %v515
    %967 = vmatpush1.bf16.msra.mxu0 %v514
    %968 = vmatprep.subr.bf16.mxu0 %v519
    %969 = vmatpush1.bf16.msra.mxu0 %v518
    %970 = vmatprep.subr.bf16.mxu0 %v523
    %971 = vmatpush1.bf16.msra.mxu0 %v522
    %972 = vmatprep.subr.bf16.mxu0 %v527
    %973 = vmatpush1.bf16.msra.mxu0 %v526
    %974 = vmatprep.subr.bf16.mxu0 0
    %975 = vmatpush1.bf16.msra.mxu0 0
    %976 = vmatprep.subr.bf16.mxu0 0
    %977 = vmatpush1.bf16.msra.mxu0 0
    %978 = vmatprep.subr.bf16.mxu0 0
    %979 = vmatpush1.bf16.msra.mxu0 0
    %980 = vmatprep.subr.bf16.mxu0 0
    %981 = vmatpush1.bf16.msra.mxu0 0
    %982 = vmatprep.subr.bf16.mxu0 0
    %983 = vmatpush1.bf16.msra.mxu0 0
    %984 = vmatprep.subr.bf16.mxu0 0
    %985 = vmatpush1.bf16.msra.mxu0 0
    %986 = vmatprep.subr.bf16.mxu0 0
    %987 = vmatpush1.bf16.msra.mxu0 0
    %988 = vmatprep.subr.bf16.mxu0 0
    %989 = vmatpush1.bf16.msra.mxu0 0
    %990 = vmatprep.mubr.bf16.mxu0 0
    %991 = vmatmul.mubr.bf16.gmra.mrb[0].mxu0 %v957
    %v992 = vpop.f32.mrb[0].mxu0
    %v993 = vadd.f32 0.0, %v992
    %v994 = vpop.f32.mrb[0].mxu0
    %v995 = vadd.f32 0.0, %v994
    %v996 = vpop.f32.mrb[0].mxu0
    %v997 = vpop.f32.mrb[0].mxu0
    %998 = vdwg.mxu0
    %999 = vmatprep.subr.bf16.mxu0 %v501
    %1000 = vmatpush1.bf16.msra.mxu0 %v500
    %1001 = vmatprep.subr.bf16.mxu0 %v505
    %1002 = vmatpush1.bf16.msra.mxu0 %v504
    %1003 = vmatprep.subr.bf16.mxu0 %v509
    %1004 = vmatpush1.bf16.msra.mxu0 %v508
    %1005 = vmatprep.subr.bf16.mxu0 %v513
    %1006 = vmatpush1.bf16.msra.mxu0 %v512
    %1007 = vmatprep.subr.bf16.mxu0 %v517
    %1008 = vmatpush1.bf16.msra.mxu0 %v516
    %1009 = vmatprep.subr.bf16.mxu0 %v521
    %1010 = vmatpush1.bf16.msra.mxu0 %v520
    %1011 = vmatprep.subr.bf16.mxu0 %v525
    %1012 = vmatpush1.bf16.msra.mxu0 %v524
    %1013 = vmatprep.subr.bf16.mxu0 %v529
    %1014 = vmatpush1.bf16.msra.mxu0 %v528
    %1015 = vmatprep.subr.bf16.mxu0 0
    %1016 = vmatpush1.bf16.msra.mxu0 0
    %1017 = vmatprep.subr.bf16.mxu0 0
    %1018 = vmatpush1.bf16.msra.mxu0 0
    %1019 = vmatprep.subr.bf16.mxu0 0
    %1020 = vmatpush1.bf16.msra.mxu0 0
    %1021 = vmatprep.subr.bf16.mxu0 0
    %1022 = vmatpush1.bf16.msra.mxu0 0
    %1023 = vmatprep.subr.bf16.mxu0 0
    %1024 = vmatpush1.bf16.msra.mxu0 0
    %1025 = vmatprep.subr.bf16.mxu0 0
    %1026 = vmatpush1.bf16.msra.mxu0 0
    %1027 = vmatprep.subr.bf16.mxu0 0
    %1028 = vmatpush1.bf16.msra.mxu0 0
    %1029 = vmatprep.subr.bf16.mxu0 0
    %1030 = vmatpush1.bf16.msra.mxu0 0
    %1031 = vmatprep.mubr.bf16.mxu0 0
    %1032 = vmatmul.mubr.bf16.gmra.mrb[0].mxu0 %v957
    %v1033 = vpop.f32.mrb[0].mxu0
    %v1034 = vadd.f32 0.0, %v1033
    %v1035 = vpop.f32.mrb[0].mxu0
    %v1036 = vadd.f32 0.0, %v1035
    %v1037 = vpop.f32.mrb[0].mxu0
    %v1038 = vpop.f32.mrb[0].mxu0
    %1039 = vdwg.mxu0
    %s1040 = scalar_lea.vmem [#allocation5], 96
    %v1041 = vld [vmem:[%s1040] sm:$0xff]
    %v1042 = vld [vmem:[%s1040 + $0x8] sm:$0xff]
    %v1043 = vld [vmem:[%s1040 + $0x10] sm:$0xff]
    %v1044 = vld [vmem:[%s1040 + $0x18] sm:$0xff]
    %v1045 = vadd.f32 %v1041, %v993
    %v1046 = vadd.f32 %v1042, %v995
    %v1047 = vadd.f32 %v1043, %v1034
    %v1048 = vadd.f32 %v1044, %v1036
    %v1049 = vxor.u32 %v1045, 2147483648
    %v1050 = vxor.u32 %v1046, 2147483648
    %v1051 = vxor.u32 %v1047, 2147483648
    %v1052 = vmul.f32 %v1049, 1.442695
    %v1053 = vpow.pop %v1052
    %v1054 = vmul.f32 %v1050, 1.442695
    %v1055 = vpow.pop %v1054
    %v1056 = vmul.f32 %v1051, 1.442695
    %v1057 = vpow.pop %v1056
    %v1058 = vadd.f32 %v1053, 1.0
    %v1059 = vadd.f32 %v1055, 1.0
    %v1060 = vadd.f32 %v1057, 1.0
    %v1061 = vrcp.pop %v1058
    %v1062 = vmul.f32 1.0, %v1061
    %v1063 = vrcp.pop %v1059
    %v1064 = vmul.f32 1.0, %v1063
    %v1065 = vrcp.pop %v1060
    %v1066 = vmul.f32 1.0, %v1065
    %v1067 = vtanh.pop %v1048
    %v1068 = vld [vmem:[#allocation3] sm:$0xff]
    %v1069 = vmul.f32 %v1064, %v1068
    %v1070 = vmul.f32 %v1062, %v1067
    %v1071 = vadd.f32 %v1069, %v1070
    %v1072 = vtanh.pop %v1071
    %v1073 = vmul.f32 %v1066, %v1072
    %1074 = vst [vmem:[#allocation3] sm:$0xff] %v1071
    %1075 = vst [vmem:[#allocation2] sm:$0xff] %v1073
    %s1076 = scalar_lea.vmem [#allocation14], 24
    %1077 = vst [vmem:[%s1076] sm:$0xff] %v1073
    %s1078 = sadd.s32 %s399, 3
    %v1079 = vstv %s1078
    %vm1080 = vcmp.eq.s32.totalorder %v398, %v1079
    %v1081 = vld [vmem:[#allocation4] sm:$0xff]
    %v1082 = vsel %vm1080, 1, 0
    %1083 = vset.pattern.permute.xlu0 0
    %1084 = vperm.xlu0 %1083, %v1082
    %v1085 = vpop.permute.xlu0 %1084
    %vm1086 = vcmp.eq.s32.totalorder %v1085, 1
    %v1087 = vsel %vm1086, %v1073, %v1081
    %1088 = vst [vmem:[#allocation4] sm:$0xff] %v1087
    %v1089 = vld [vmem:[#allocation2] sm:$0xff]
    %v1090 = vpack.c.bf16 %v1089, %v1089
    %1091 = vmatprep.subr.bf16.mxu0 %v499
    %1092 = vmatpush1.bf16.msra.mxu0 %v498
    %1093 = vmatprep.subr.bf16.mxu0 %v503
    %1094 = vmatpush1.bf16.msra.mxu0 %v502
    %1095 = vmatprep.subr.bf16.mxu0 %v507
    %1096 = vmatpush1.bf16.msra.mxu0 %v506
    %1097 = vmatprep.subr.bf16.mxu0 %v511
    %1098 = vmatpush1.bf16.msra.mxu0 %v510
    %1099 = vmatprep.subr.bf16.mxu0 %v515
    %1100 = vmatpush1.bf16.msra.mxu0 %v514
    %1101 = vmatprep.subr.bf16.mxu0 %v519
    %1102 = vmatpush1.bf16.msra.mxu0 %v518
    %1103 = vmatprep.subr.bf16.mxu0 %v523
    %1104 = vmatpush1.bf16.msra.mxu0 %v522
    %1105 = vmatprep.subr.bf16.mxu0 %v527
    %1106 = vmatpush1.bf16.msra.mxu0 %v526
    %1107 = vmatprep.subr.bf16.mxu0 0
    %1108 = vmatpush1.bf16.msra.mxu0 0
    %1109 = vmatprep.subr.bf16.mxu0 0
    %1110 = vmatpush1.bf16.msra.mxu0 0
    %1111 = vmatprep.subr.bf16.mxu0 0
    %1112 = vmatpush1.bf16.msra.mxu0 0
    %1113 = vmatprep.subr.bf16.mxu0 0
    %1114 = vmatpush1.bf16.msra.mxu0 0
    %1115 = vmatprep.subr.bf16.mxu0 0
    %1116 = vmatpush1.bf16.msra.mxu0 0
    %1117 = vmatprep.subr.bf16.mxu0 0
    %1118 = vmatpush1.bf16.msra.mxu0 0
    %1119 = vmatprep.subr.bf16.mxu0 0
    %1120 = vmatpush1.bf16.msra.mxu0 0
    %1121 = vmatprep.subr.bf16.mxu0 0
    %1122 = vmatpush1.bf16.msra.mxu0 0
    %1123 = vmatprep.mubr.bf16.mxu0 0
    %1124 = vmatmul.mubr.bf16.gmra.mrb[0].mxu0 %v1090
    %v1125 = vpop.f32.mrb[0].mxu0
    %v1126 = vadd.f32 0.0, %v1125
    %v1127 = vpop.f32.mrb[0].mxu0
    %v1128 = vadd.f32 0.0, %v1127
    %v1129 = vpop.f32.mrb[0].mxu0
    %v1130 = vpop.f32.mrb[0].mxu0
    %1131 = vdwg.mxu0
    %1132 = vmatprep.subr.bf16.mxu0 %v501
    %1133 = vmatpush1.bf16.msra.mxu0 %v500
    %1134 = vmatprep.subr.bf16.mxu0 %v505
    %1135 = vmatpush1.bf16.msra.mxu0 %v504
    %1136 = vmatprep.subr.bf16.mxu0 %v509
    %1137 = vmatpush1.bf16.msra.mxu0 %v508
    %1138 = vmatprep.subr.bf16.mxu0 %v513
    %1139 = vmatpush1.bf16.msra.mxu0 %v512
    %1140 = vmatprep.subr.bf16.mxu0 %v517
    %1141 = vmatpush1.bf16.msra.mxu0 %v516
    %1142 = vmatprep.subr.bf16.mxu0 %v521
    %1143 = vmatpush1.bf16.msra.mxu0 %v520
    %1144 = vmatprep.subr.bf16.mxu0 %v525
    %1145 = vmatpush1.bf16.msra.mxu0 %v524
    %1146 = vmatprep.subr.bf16.mxu0 %v529
    %1147 = vmatpush1.bf16.msra.mxu0 %v528
    %1148 = vmatprep.subr.bf16.mxu0 0
    %1149 = vmatpush1.bf16.msra.mxu0 0
    %1150 = vmatprep.subr.bf16.mxu0 0
    %1151 = vmatpush1.bf16.msra.mxu0 0
    %1152 = vmatprep.subr.bf16.mxu0 0
    %1153 = vmatpush1.bf16.msra.mxu0 0
    %1154 = vmatprep.subr.bf16.mxu0 0
    %1155 = vmatpush1.bf16.msra.mxu0 0
    %1156 = vmatprep.subr.bf16.mxu0 0
    %1157 = vmatpush1.bf16.msra.mxu0 0
    %1158 = vmatprep.subr.bf16.mxu0 0
    %1159 = vmatpush1.bf16.msra.mxu0 0
    %1160 = vmatprep.subr.bf16.mxu0 0
    %1161 = vmatpush1.bf16.msra.mxu0 0
    %1162 = vmatprep.subr.bf16.mxu0 0
    %1163 = vmatpush1.bf16.msra.mxu0 0
    %1164 = vmatprep.mubr.bf16.mxu0 0
    %1165 = vmatmul.mubr.bf16.gmra.mrb[0].mxu0 %v1090
    %v1166 = vpop.f32.mrb[0].mxu0
    %v1167 = vadd.f32 0.0, %v1166
    %v1168 = vpop.f32.mrb[0].mxu0
    %v1169 = vadd.f32 0.0, %v1168
    %v1170 = vpop.f32.mrb[0].mxu0
    %v1171 = vpop.f32.mrb[0].mxu0
    %1172 = vdwg.mxu0
    %s1173 = scalar_lea.vmem [#allocation5], 128
    %v1174 = vld [vmem:[%s1173] sm:$0xff]
    %v1175 = vld [vmem:[%s1173 + $0x8] sm:$0xff]
    %v1176 = vld [vmem:[%s1173 + $0x10] sm:$0xff]
    %v1177 = vld [vmem:[%s1173 + $0x18] sm:$0xff]
    %v1178 = vadd.f32 %v1174, %v1126
    %v1179 = vadd.f32 %v1175, %v1128
    %v1180 = vadd.f32 %v1176, %v1167
    %v1181 = vadd.f32 %v1177, %v1169
    %v1182 = vxor.u32 %v1178, 2147483648
    %v1183 = vxor.u32 %v1179, 2147483648
    %v1184 = vxor.u32 %v1180, 2147483648
    %v1185 = vmul.f32 %v1182, 1.442695
    %v1186 = vpow.pop %v1185
    %v1187 = vmul.f32 %v1183, 1.442695
    %v1188 = vpow.pop %v1187
    %v1189 = vmul.f32 %v1184, 1.442695
    %v1190 = vpow.pop %v1189
    %v1191 = vadd.f32 %v1186, 1.0
    %v1192 = vadd.f32 %v1188, 1.0
    %v1193 = vadd.f32 %v1190, 1.0
    %v1194 = vrcp.pop %v1191
    %v1195 = vmul.f32 1.0, %v1194
    %v1196 = vrcp.pop %v1192
    %v1197 = vmul.f32 1.0, %v1196
    %v1198 = vrcp.pop %v1193
    %v1199 = vmul.f32 1.0, %v1198
    %v1200 = vtanh.pop %v1181
    %v1201 = vld [vmem:[#allocation3] sm:$0xff]
    %v1202 = vmul.f32 %v1197, %v1201
    %v1203 = vmul.f32 %v1195, %v1200
    %v1204 = vadd.f32 %v1202, %v1203
    %v1205 = vtanh.pop %v1204
    %v1206 = vmul.f32 %v1199, %v1205
    %1207 = vst [vmem:[#allocation3] sm:$0xff] %v1204
    %1208 = vst [vmem:[#allocation2] sm:$0xff] %v1206
    %s1209 = scalar_lea.vmem [#allocation14], 32
    %1210 = vst [vmem:[%s1209] sm:$0xff] %v1206
    %s1211 = sadd.s32 %s399, 4
    %v1212 = vstv %s1211
    %vm1213 = vcmp.eq.s32.totalorder %v398, %v1212
    %v1214 = vld [vmem:[#allocation4] sm:$0xff]
    %v1215 = vsel %vm1213, 1, 0
    %1216 = vset.pattern.permute.xlu0 0
    %1217 = vperm.xlu0 %1216, %v1215
    %v1218 = vpop.permute.xlu0 %1217
    %vm1219 = vcmp.eq.s32.totalorder %v1218, 1
    %v1220 = vsel %vm1219, %v1206, %v1214
    %1221 = vst [vmem:[#allocation4] sm:$0xff] %v1220
    %v1222 = vld [vmem:[#allocation2] sm:$0xff]
    %v1223 = vpack.c.bf16 %v1222, %v1222
    %1224 = vmatprep.subr.bf16.mxu0 %v499
    %1225 = vmatpush1.bf16.msra.mxu0 %v498
    %1226 = vmatprep.subr.bf16.mxu0 %v503
    %1227 = vmatpush1.bf16.msra.mxu0 %v502
    %1228 = vmatprep.subr.bf16.mxu0 %v507
    %1229 = vmatpush1.bf16.msra.mxu0 %v506
    %1230 = vmatprep.subr.bf16.mxu0 %v511
    %1231 = vmatpush1.bf16.msra.mxu0 %v510
    %1232 = vmatprep.subr.bf16.mxu0 %v515
    %1233 = vmatpush1.bf16.msra.mxu0 %v514
    %1234 = vmatprep.subr.bf16.mxu0 %v519
    %1235 = vmatpush1.bf16.msra.mxu0 %v518
    %1236 = vmatprep.subr.bf16.mxu0 %v523
    %1237 = vmatpush1.bf16.msra.mxu0 %v522
    %1238 = vmatprep.subr.bf16.mxu0 %v527
    %1239 = vmatpush1.bf16.msra.mxu0 %v526
    %1240 = vmatprep.subr.bf16.mxu0 0
    %1241 = vmatpush1.bf16.msra.mxu0 0
    %1242 = vmatprep.subr.bf16.mxu0 0
    %1243 = vmatpush1.bf16.msra.mxu0 0
    %1244 = vmatprep.subr.bf16.mxu0 0
    %1245 = vmatpush1.bf16.msra.mxu0 0
    %1246 = vmatprep.subr.bf16.mxu0 0
    %1247 = vmatpush1.bf16.msra.mxu0 0
    %1248 = vmatprep.subr.bf16.mxu0 0
    %1249 = vmatpush1.bf16.msra.mxu0 0
    %1250 = vmatprep.subr.bf16.mxu0 0
    %1251 = vmatpush1.bf16.msra.mxu0 0
    %1252 = vmatprep.subr.bf16.mxu0 0
    %1253 = vmatpush1.bf16.msra.mxu0 0
    %1254 = vmatprep.subr.bf16.mxu0 0
    %1255 = vmatpush1.bf16.msra.mxu0 0
    %1256 = vmatprep.mubr.bf16.mxu0 0
    %1257 = vmatmul.mubr.bf16.gmra.mrb[0].mxu0 %v1223
    %v1258 = vpop.f32.mrb[0].mxu0
    %v1259 = vadd.f32 0.0, %v1258
    %v1260 = vpop.f32.mrb[0].mxu0
    %v1261 = vadd.f32 0.0, %v1260
    %v1262 = vpop.f32.mrb[0].mxu0
    %v1263 = vpop.f32.mrb[0].mxu0
    %1264 = vdwg.mxu0
    %1265 = vmatprep.subr.bf16.mxu0 %v501
    %1266 = vmatpush1.bf16.msra.mxu0 %v500
    %1267 = vmatprep.subr.bf16.mxu0 %v505
    %1268 = vmatpush1.bf16.msra.mxu0 %v504
    %1269 = vmatprep.subr.bf16.mxu0 %v509
    %1270 = vmatpush1.bf16.msra.mxu0 %v508
    %1271 = vmatprep.subr.bf16.mxu0 %v513
    %1272 = vmatpush1.bf16.msra.mxu0 %v512
    %1273 = vmatprep.subr.bf16.mxu0 %v517
    %1274 = vmatpush1.bf16.msra.mxu0 %v516
    %1275 = vmatprep.subr.bf16.mxu0 %v521
    %1276 = vmatpush1.bf16.msra.mxu0 %v520
    %1277 = vmatprep.subr.bf16.mxu0 %v525
    %1278 = vmatpush1.bf16.msra.mxu0 %v524
    %1279 = vmatprep.subr.bf16.mxu0 %v529
    %1280 = vmatpush1.bf16.msra.mxu0 %v528
    %1281 = vmatprep.subr.bf16.mxu0 0
    %1282 = vmatpush1.bf16.msra.mxu0 0
    %1283 = vmatprep.subr.bf16.mxu0 0
    %1284 = vmatpush1.bf16.msra.mxu0 0
    %1285 = vmatprep.subr.bf16.mxu0 0
    %1286 = vmatpush1.bf16.msra.mxu0 0
    %1287 = vmatprep.subr.bf16.mxu0 0
    %1288 = vmatpush1.bf16.msra.mxu0 0
    %1289 = vmatprep.subr.bf16.mxu0 0
    %1290 = vmatpush1.bf16.msra.mxu0 0
    %1291 = vmatprep.subr.bf16.mxu0 0
    %1292 = vmatpush1.bf16.msra.mxu0 0
    %1293 = vmatprep.subr.bf16.mxu0 0
    %1294 = vmatpush1.bf16.msra.mxu0 0
    %1295 = vmatprep.subr.bf16.mxu0 0
    %1296 = vmatpush1.bf16.msra.mxu0 0
    %1297 = vmatprep.mubr.bf16.mxu0 0
    %1298 = vmatmul.mubr.bf16.gmra.mrb[0].mxu0 %v1223
    %v1299 = vpop.f32.mrb[0].mxu0
    %v1300 = vadd.f32 0.0, %v1299
    %v1301 = vpop.f32.mrb[0].mxu0
    %v1302 = vadd.f32 0.0, %v1301
    %v1303 = vpop.f32.mrb[0].mxu0
    %v1304 = vpop.f32.mrb[0].mxu0
    %1305 = vdwg.mxu0
    %s1306 = scalar_lea.vmem [#allocation5], 160
    %v1307 = vld [vmem:[%s1306] sm:$0xff]
    %v1308 = vld [vmem:[%s1306 + $0x8] sm:$0xff]
    %v1309 = vld [vmem:[%s1306 + $0x10] sm:$0xff]
    %v1310 = vld [vmem:[%s1306 + $0x18] sm:$0xff]
    %v1311 = vadd.f32 %v1307, %v1259
    %v1312 = vadd.f32 %v1308, %v1261
    %v1313 = vadd.f32 %v1309, %v1300
    %v1314 = vadd.f32 %v1310, %v1302
    %v1315 = vxor.u32 %v1311, 2147483648
    %v1316 = vxor.u32 %v1312, 2147483648
    %v1317 = vxor.u32 %v1313, 2147483648
    %v1318 = vmul.f32 %v1315, 1.442695
    %v1319 = vpow.pop %v1318
    %v1320 = vmul.f32 %v1316, 1.442695
    %v1321 = vpow.pop %v1320
    %v1322 = vmul.f32 %v1317, 1.442695
    %v1323 = vpow.pop %v1322
    %v1324 = vadd.f32 %v1319, 1.0
    %v1325 = vadd.f32 %v1321, 1.0
    %v1326 = vadd.f32 %v1323, 1.0
    %v1327 = vrcp.pop %v1324
    %v1328 = vmul.f32 1.0, %v1327
    %v1329 = vrcp.pop %v1325
    %v1330 = vmul.f32 1.0, %v1329
    %v1331 = vrcp.pop %v1326
    %v1332 = vmul.f32 1.0, %v1331
    %v1333 = vtanh.pop %v1314
    %v1334 = vld [vmem:[#allocation3] sm:$0xff]
    %v1335 = vmul.f32 %v1330, %v1334
    %v1336 = vmul.f32 %v1328, %v1333
    %v1337 = vadd.f32 %v1335, %v1336
    %v1338 = vtanh.pop %v1337
    %v1339 = vmul.f32 %v1332, %v1338
    %1340 = vst [vmem:[#allocation3] sm:$0xff] %v1337
    %1341 = vst [vmem:[#allocation2] sm:$0xff] %v1339
    %s1342 = scalar_lea.vmem [#allocation14], 40
    %1343 = vst [vmem:[%s1342] sm:$0xff] %v1339
    %s1344 = sadd.s32 %s399, 5
    %v1345 = vstv %s1344
    %vm1346 = vcmp.eq.s32.totalorder %v398, %v1345
    %v1347 = vld [vmem:[#allocation4] sm:$0xff]
    %v1348 = vsel %vm1346, 1, 0
    %1349 = vset.pattern.permute.xlu0 0
    %1350 = vperm.xlu0 %1349, %v1348
    %v1351 = vpop.permute.xlu0 %1350
    %vm1352 = vcmp.eq.s32.totalorder %v1351, 1
    %v1353 = vsel %vm1352, %v1339, %v1347
    %1354 = vst [vmem:[#allocation4] sm:$0xff] %v1353
    %v1355 = vld [vmem:[#allocation2] sm:$0xff]
    %v1356 = vpack.c.bf16 %v1355, %v1355
    %1357 = vmatprep.subr.bf16.mxu0 %v499
    %1358 = vmatpush1.bf16.msra.mxu0 %v498
    %1359 = vmatprep.subr.bf16.mxu0 %v503
    %1360 = vmatpush1.bf16.msra.mxu0 %v502
    %1361 = vmatprep.subr.bf16.mxu0 %v507
    %1362 = vmatpush1.bf16.msra.mxu0 %v506
    %1363 = vmatprep.subr.bf16.mxu0 %v511
    %1364 = vmatpush1.bf16.msra.mxu0 %v510
    %1365 = vmatprep.subr.bf16.mxu0 %v515
    %1366 = vmatpush1.bf16.msra.mxu0 %v514
    %1367 = vmatprep.subr.bf16.mxu0 %v519
    %1368 = vmatpush1.bf16.msra.mxu0 %v518
    %1369 = vmatprep.subr.bf16.mxu0 %v523
    %1370 = vmatpush1.bf16.msra.mxu0 %v522
    %1371 = vmatprep.subr.bf16.mxu0 %v527
    %1372 = vmatpush1.bf16.msra.mxu0 %v526
    %1373 = vmatprep.subr.bf16.mxu0 0
    %1374 = vmatpush1.bf16.msra.mxu0 0
    %1375 = vmatprep.subr.bf16.mxu0 0
    %1376 = vmatpush1.bf16.msra.mxu0 0
    %1377 = vmatprep.subr.bf16.mxu0 0
    %1378 = vmatpush1.bf16.msra.mxu0 0
    %1379 = vmatprep.subr.bf16.mxu0 0
    %1380 = vmatpush1.bf16.msra.mxu0 0
    %1381 = vmatprep.subr.bf16.mxu0 0
    %1382 = vmatpush1.bf16.msra.mxu0 0
    %1383 = vmatprep.subr.bf16.mxu0 0
    %1384 = vmatpush1.bf16.msra.mxu0 0
    %1385 = vmatprep.subr.bf16.mxu0 0
    %1386 = vmatpush1.bf16.msra.mxu0 0
    %1387 = vmatprep.subr.bf16.mxu0 0
    %1388 = vmatpush1.bf16.msra.mxu0 0
    %1389 = vmatprep.mubr.bf16.mxu0 0
    %1390 = vmatmul.mubr.bf16.gmra.mrb[0].mxu0 %v1356
    %v1391 = vpop.f32.mrb[0].mxu0
    %v1392 = vadd.f32 0.0, %v1391
    %v1393 = vpop.f32.mrb[0].mxu0
    %v1394 = vadd.f32 0.0, %v1393
    %v1395 = vpop.f32.mrb[0].mxu0
    %v1396 = vpop.f32.mrb[0].mxu0
    %1397 = vdwg.mxu0
    %1398 = vmatprep.subr.bf16.mxu0 %v501
    %1399 = vmatpush1.bf16.msra.mxu0 %v500
    %1400 = vmatprep.subr.bf16.mxu0 %v505
    %1401 = vmatpush1.bf16.msra.mxu0 %v504
    %1402 = vmatprep.subr.bf16.mxu0 %v509
    %1403 = vmatpush1.bf16.msra.mxu0 %v508
    %1404 = vmatprep.subr.bf16.mxu0 %v513
    %1405 = vmatpush1.bf16.msra.mxu0 %v512
    %1406 = vmatprep.subr.bf16.mxu0 %v517
    %1407 = vmatpush1.bf16.msra.mxu0 %v516
    %1408 = vmatprep.subr.bf16.mxu0 %v521
    %1409 = vmatpush1.bf16.msra.mxu0 %v520
    %1410 = vmatprep.subr.bf16.mxu0 %v525
    %1411 = vmatpush1.bf16.msra.mxu0 %v524
    %1412 = vmatprep.subr.bf16.mxu0 %v529
    %1413 = vmatpush1.bf16.msra.mxu0 %v528
    %1414 = vmatprep.subr.bf16.mxu0 0
    %1415 = vmatpush1.bf16.msra.mxu0 0
    %1416 = vmatprep.subr.bf16.mxu0 0
    %1417 = vmatpush1.bf16.msra.mxu0 0
    %1418 = vmatprep.subr.bf16.mxu0 0
    %1419 = vmatpush1.bf16.msra.mxu0 0
    %1420 = vmatprep.subr.bf16.mxu0 0
    %1421 = vmatpush1.bf16.msra.mxu0 0
    %1422 = vmatprep.subr.bf16.mxu0 0
    %1423 = vmatpush1.bf16.msra.mxu0 0
    %1424 = vmatprep.subr.bf16.mxu0 0
    %1425 = vmatpush1.bf16.msra.mxu0 0
    %1426 = vmatprep.subr.bf16.mxu0 0
    %1427 = vmatpush1.bf16.msra.mxu0 0
    %1428 = vmatprep.subr.bf16.mxu0 0
    %1429 = vmatpush1.bf16.msra.mxu0 0
    %1430 = vmatprep.mubr.bf16.mxu0 0
    %1431 = vmatmul.mubr.bf16.gmra.mrb[0].mxu0 %v1356
    %v1432 = vpop.f32.mrb[0].mxu0
    %v1433 = vadd.f32 0.0, %v1432
    %v1434 = vpop.f32.mrb[0].mxu0
    %v1435 = vadd.f32 0.0, %v1434
    %v1436 = vpop.f32.mrb[0].mxu0
    %v1437 = vpop.f32.mrb[0].mxu0
    %1438 = vdwg.mxu0
    %s1439 = scalar_lea.vmem [#allocation5], 192
    %v1440 = vld [vmem:[%s1439] sm:$0xff]
    %v1441 = vld [vmem:[%s1439 + $0x8] sm:$0xff]
    %v1442 = vld [vmem:[%s1439 + $0x10] sm:$0xff]
    %v1443 = vld [vmem:[%s1439 + $0x18] sm:$0xff]
    %v1444 = vadd.f32 %v1440, %v1392
    %v1445 = vadd.f32 %v1441, %v1394
    %v1446 = vadd.f32 %v1442, %v1433
    %v1447 = vadd.f32 %v1443, %v1435
    %v1448 = vxor.u32 %v1444, 2147483648
    %v1449 = vxor.u32 %v1445, 2147483648
    %v1450 = vxor.u32 %v1446, 2147483648
    %v1451 = vmul.f32 %v1448, 1.442695
    %v1452 = vpow.pop %v1451
    %v1453 = vmul.f32 %v1449, 1.442695
    %v1454 = vpow.pop %v1453
    %v1455 = vmul.f32 %v1450, 1.442695
    %v1456 = vpow.pop %v1455
    %v1457 = vadd.f32 %v1452, 1.0
    %v1458 = vadd.f32 %v1454, 1.0
    %v1459 = vadd.f32 %v1456, 1.0
    %v1460 = vrcp.pop %v1457
    %v1461 = vmul.f32 1.0, %v1460
    %v1462 = vrcp.pop %v1458
    %v1463 = vmul.f32 1.0, %v1462
    %v1464 = vrcp.pop %v1459
    %v1465 = vmul.f32 1.0, %v1464
    %v1466 = vtanh.pop %v1447
    %v1467 = vld [vmem:[#allocation3] sm:$0xff]
    %v1468 = vmul.f32 %v1463, %v1467
    %v1469 = vmul.f32 %v1461, %v1466
    %v1470 = vadd.f32 %v1468, %v1469
    %v1471 = vtanh.pop %v1470
    %v1472 = vmul.f32 %v1465, %v1471
    %1473 = vst [vmem:[#allocation3] sm:$0xff] %v1470
    %1474 = vst [vmem:[#allocation2] sm:$0xff] %v1472
    %s1475 = scalar_lea.vmem [#allocation14], 48
    %1476 = vst [vmem:[%s1475] sm:$0xff] %v1472
    %s1477 = sadd.s32 %s399, 6
    %v1478 = vstv %s1477
    %vm1479 = vcmp.eq.s32.totalorder %v398, %v1478
    %v1480 = vld [vmem:[#allocation4] sm:$0xff]
    %v1481 = vsel %vm1479, 1, 0
    %1482 = vset.pattern.permute.xlu0 0
    %1483 = vperm.xlu0 %1482, %v1481
    %v1484 = vpop.permute.xlu0 %1483
    %vm1485 = vcmp.eq.s32.totalorder %v1484, 1
    %v1486 = vsel %vm1485, %v1472, %v1480
    %1487 = vst [vmem:[#allocation4] sm:$0xff] %v1486
    %v1488 = vld [vmem:[#allocation2] sm:$0xff]
    %v1489 = vpack.c.bf16 %v1488, %v1488
    %1490 = vmatprep.subr.bf16.mxu0 %v499
    %1491 = vmatpush1.bf16.msra.mxu0 %v498
    %1492 = vmatprep.subr.bf16.mxu0 %v503
    %1493 = vmatpush1.bf16.msra.mxu0 %v502
    %1494 = vmatprep.subr.bf16.mxu0 %v507
    %1495 = vmatpush1.bf16.msra.mxu0 %v506
    %1496 = vmatprep.subr.bf16.mxu0 %v511
    %1497 = vmatpush1.bf16.msra.mxu0 %v510
    %1498 = vmatprep.subr.bf16.mxu0 %v515
    %1499 = vmatpush1.bf16.msra.mxu0 %v514
    %1500 = vmatprep.subr.bf16.mxu0 %v519
    %1501 = vmatpush1.bf16.msra.mxu0 %v518
    %1502 = vmatprep.subr.bf16.mxu0 %v523
    %1503 = vmatpush1.bf16.msra.mxu0 %v522
    %1504 = vmatprep.subr.bf16.mxu0 %v527
    %1505 = vmatpush1.bf16.msra.mxu0 %v526
    %1506 = vmatprep.subr.bf16.mxu0 0
    %1507 = vmatpush1.bf16.msra.mxu0 0
    %1508 = vmatprep.subr.bf16.mxu0 0
    %1509 = vmatpush1.bf16.msra.mxu0 0
    %1510 = vmatprep.subr.bf16.mxu0 0
    %1511 = vmatpush1.bf16.msra.mxu0 0
    %1512 = vmatprep.subr.bf16.mxu0 0
    %1513 = vmatpush1.bf16.msra.mxu0 0
    %1514 = vmatprep.subr.bf16.mxu0 0
    %1515 = vmatpush1.bf16.msra.mxu0 0
    %1516 = vmatprep.subr.bf16.mxu0 0
    %1517 = vmatpush1.bf16.msra.mxu0 0
    %1518 = vmatprep.subr.bf16.mxu0 0
    %1519 = vmatpush1.bf16.msra.mxu0 0
    %1520 = vmatprep.subr.bf16.mxu0 0
    %1521 = vmatpush1.bf16.msra.mxu0 0
    %1522 = vmatprep.mubr.bf16.mxu0 0
    %1523 = vmatmul.mubr.bf16.gmra.mrb[0].mxu0 %v1489
    %v1524 = vpop.f32.mrb[0].mxu0
    %v1525 = vadd.f32 0.0, %v1524
    %v1526 = vpop.f32.mrb[0].mxu0
    %v1527 = vadd.f32 0.0, %v1526
    %v1528 = vpop.f32.mrb[0].mxu0
    %v1529 = vpop.f32.mrb[0].mxu0
    %1530 = vdwg.mxu0
    %1531 = vmatprep.subr.bf16.mxu0 %v501
    %1532 = vmatpush1.bf16.msra.mxu0 %v500
    %1533 = vmatprep.subr.bf16.mxu0 %v505
    %1534 = vmatpush1.bf16.msra.mxu0 %v504
    %1535 = vmatprep.subr.bf16.mxu0 %v509
    %1536 = vmatpush1.bf16.msra.mxu0 %v508
    %1537 = vmatprep.subr.bf16.mxu0 %v513
    %1538 = vmatpush1.bf16.msra.mxu0 %v512
    %1539 = vmatprep.subr.bf16.mxu0 %v517
    %1540 = vmatpush1.bf16.msra.mxu0 %v516
    %1541 = vmatprep.subr.bf16.mxu0 %v521
    %1542 = vmatpush1.bf16.msra.mxu0 %v520
    %1543 = vmatprep.subr.bf16.mxu0 %v525
    %1544 = vmatpush1.bf16.msra.mxu0 %v524
    %1545 = vmatprep.subr.bf16.mxu0 %v529
    %1546 = vmatpush1.bf16.msra.mxu0 %v528
    %1547 = vmatprep.subr.bf16.mxu0 0
    %1548 = vmatpush1.bf16.msra.mxu0 0
    %1549 = vmatprep.subr.bf16.mxu0 0
    %1550 = vmatpush1.bf16.msra.mxu0 0
    %1551 = vmatprep.subr.bf16.mxu0 0
    %1552 = vmatpush1.bf16.msra.mxu0 0
    %1553 = vmatprep.subr.bf16.mxu0 0
    %1554 = vmatpush1.bf16.msra.mxu0 0
    %1555 = vmatprep.subr.bf16.mxu0 0
    %1556 = vmatpush1.bf16.msra.mxu0 0
    %1557 = vmatprep.subr.bf16.mxu0 0
    %1558 = vmatpush1.bf16.msra.mxu0 0
    %1559 = vmatprep.subr.bf16.mxu0 0
    %1560 = vmatpush1.bf16.msra.mxu0 0
    %1561 = vmatprep.subr.bf16.mxu0 0
    %1562 = vmatpush1.bf16.msra.mxu0 0
    %1563 = vmatprep.mubr.bf16.mxu0 0
    %1564 = vmatmul.mubr.bf16.gmra.mrb[0].mxu0 %v1489
    %v1565 = vpop.f32.mrb[0].mxu0
    %v1566 = vadd.f32 0.0, %v1565
    %v1567 = vpop.f32.mrb[0].mxu0
    %v1568 = vadd.f32 0.0, %v1567
    %v1569 = vpop.f32.mrb[0].mxu0
    %v1570 = vpop.f32.mrb[0].mxu0
    %1571 = vdwg.mxu0
    %s1572 = scalar_lea.vmem [#allocation5], 224
    %v1573 = vld [vmem:[%s1572] sm:$0xff]
    %v1574 = vld [vmem:[%s1572 + $0x8] sm:$0xff]
    %v1575 = vld [vmem:[%s1572 + $0x10] sm:$0xff]
    %v1576 = vld [vmem:[%s1572 + $0x18] sm:$0xff]
    %v1577 = vadd.f32 %v1573, %v1525
    %v1578 = vadd.f32 %v1574, %v1527
    %v1579 = vadd.f32 %v1575, %v1566
    %v1580 = vadd.f32 %v1576, %v1568
    %v1581 = vxor.u32 %v1577, 2147483648
    %v1582 = vxor.u32 %v1578, 2147483648
    %v1583 = vxor.u32 %v1579, 2147483648
    %v1584 = vmul.f32 %v1581, 1.442695
    %v1585 = vpow.pop %v1584
    %v1586 = vmul.f32 %v1582, 1.442695
    %v1587 = vpow.pop %v1586
    %v1588 = vmul.f32 %v1583, 1.442695
    %v1589 = vpow.pop %v1588
    %v1590 = vadd.f32 %v1585, 1.0
    %v1591 = vadd.f32 %v1587, 1.0
    %v1592 = vadd.f32 %v1589, 1.0
    %v1593 = vrcp.pop %v1590
    %v1594 = vmul.f32 1.0, %v1593
    %v1595 = vrcp.pop %v1591
    %v1596 = vmul.f32 1.0, %v1595
    %v1597 = vrcp.pop %v1592
    %v1598 = vmul.f32 1.0, %v1597
    %v1599 = vtanh.pop %v1580
    %v1600 = vld [vmem:[#allocation3] sm:$0xff]
    %v1601 = vmul.f32 %v1596, %v1600
    %v1602 = vmul.f32 %v1594, %v1599
    %v1603 = vadd.f32 %v1601, %v1602
    %v1604 = vtanh.pop %v1603
    %v1605 = vmul.f32 %v1598, %v1604
    %1606 = vst [vmem:[#allocation3] sm:$0xff] %v1603
    %1607 = vst [vmem:[#allocation2] sm:$0xff] %v1605
    %s1608 = scalar_lea.vmem [#allocation14], 56
    %1609 = vst [vmem:[%s1608] sm:$0xff] %v1605
    %s1610 = sadd.s32 %s399, 7
    %v1611 = vstv %s1610
    %vm1612 = vcmp.eq.s32.totalorder %v398, %v1611
    %v1613 = vld [vmem:[#allocation4] sm:$0xff]
    %v1614 = vsel %vm1612, 1, 0
    %1615 = vset.pattern.permute.xlu0 0
    %1616 = vperm.xlu0 %1615, %v1614
    %v1617 = vpop.permute.xlu0 %1616
    %vm1618 = vcmp.eq.s32.totalorder %v1617, 1
    %v1619 = vsel %vm1618, %v1605, %v1613
    %1620 = vst [vmem:[#allocation4] sm:$0xff] %v1619
    // Predicated region
    $region50: #{tpu_custom_call.1} parent=1 // pred_check
      %p1621 = pneg %p86
    $region51: #{tpu_custom_call.1} parent=1 // pred_check_branch
      %1623 = sbr.rel (%p1621) target = $region53
    $region52: #{tpu_custom_call.1} parent=1 // pred_region
      %v1624 = vld [vmem:[#allocation4] sm:$0xff]
      %v1625 = vpack.c.bf16 %v1624, %v1624
      %v1626 = vld [vmem:[#allocation12] sm:$0xf]
      %v1627 = vld [vmem:[#allocation12 + $0x4] sm:$0xf]
      %v1628 = vld [vmem:[#allocation12 + $0x8] sm:$0xf]
      %v1629 = vld [vmem:[#allocation12 + $0xc] sm:$0xf]
      %v1630 = vld [vmem:[#allocation12 + $0x10] sm:$0xf]
      %v1631 = vld [vmem:[#allocation12 + $0x14] sm:$0xf]
      %v1632 = vld [vmem:[#allocation12 + $0x18] sm:$0xf]
      %v1633 = vld [vmem:[#allocation12 + $0x1c] sm:$0xf]
      %v1634 = vld [vmem:[#allocation12 + $0x20] sm:$0xf]
      %v1635 = vld [vmem:[#allocation12 + $0x24] sm:$0xf]
      %v1636 = vld [vmem:[#allocation12 + $0x28] sm:$0xf]
      %v1637 = vld [vmem:[#allocation12 + $0x2c] sm:$0xf]
      %v1638 = vld [vmem:[#allocation12 + $0x30] sm:$0xf]
      %v1639 = vld [vmem:[#allocation12 + $0x34] sm:$0xf]
      %v1640 = vld [vmem:[#allocation12 + $0x38] sm:$0xf]
      %v1641 = vld [vmem:[#allocation12 + $0x3c] sm:$0xf]
      %v1642 = vld [vmem:[%s6] sm:$0x1]
      %v1644 = vlaneseq
      %v1645 = vshrl.u32 %v1644, 7
      %v1646 = vsub.s32 0, %v1645
      %v1647 = vrot.slane %v1642, %v1646
      %v1665 = vunpack.c.l.b16 %v1626
      %v1666 = vunpack.c.l.b16 %v1627
      %v1667 = vunpack.c.l.b16 %v1628
      %v1668 = vunpack.c.l.b16 %v1629
      %v1669 = vunpack.c.l.b16 %v1630
      %v1670 = vunpack.c.l.b16 %v1631
      %v1671 = vunpack.c.l.b16 %v1632
      %v1672 = vunpack.c.l.b16 %v1633
      %v1673 = vunpack.c.l.b16 %v1634
      %v1674 = vunpack.c.l.b16 %v1635
      %v1675 = vunpack.c.l.b16 %v1636
      %v1676 = vunpack.c.l.b16 %v1637
      %v1677 = vunpack.c.l.b16 %v1638
      %v1678 = vunpack.c.l.b16 %v1639
      %v1679 = vunpack.c.l.b16 %v1640
      %v1680 = vunpack.c.l.b16 %v1641
      %v1681 = vpack.c.b16 %v1666, %v1665
      %v1682 = vpack.c.b16 %v1668, %v1667
      %v1683 = vpack.c.b16 %v1670, %v1669
      %v1684 = vpack.c.b16 %v1672, %v1671
      %v1685 = vpack.c.b16 %v1674, %v1673
      %v1686 = vpack.c.b16 %v1676, %v1675
      %v1687 = vpack.c.b16 %v1678, %v1677
      %v1688 = vpack.c.b16 %v1680, %v1679
      %1697 = vmatprep.subr.bf16.mxu0 0
      %1698 = vmatpush1.bf16.msra.mxu0 %v1681
      %1699 = vmatprep.subr.bf16.mxu0 0
      %1700 = vmatpush1.bf16.msra.mxu0 %v1682
      %1701 = vmatprep.subr.bf16.mxu0 0
      %1702 = vmatpush1.bf16.msra.mxu0 %v1683
      %1703 = vmatprep.subr.bf16.mxu0 0
      %1704 = vmatpush1.bf16.msra.mxu0 %v1684
      %1705 = vmatprep.subr.bf16.mxu0 0
      %1706 = vmatpush1.bf16.msra.mxu0 %v1685
      %1707 = vmatprep.subr.bf16.mxu0 0
      %1708 = vmatpush1.bf16.msra.mxu0 %v1686
      %1709 = vmatprep.subr.bf16.mxu0 0
      %1710 = vmatpush1.bf16.msra.mxu0 %v1687
      %1711 = vmatprep.subr.bf16.mxu0 0
      %1712 = vmatpush1.bf16.msra.mxu0 %v1688
      %1713 = vmatprep.subr.bf16.mxu0 0
      %1714 = vmatpush1.bf16.msra.mxu0 0
      %1715 = vmatprep.subr.bf16.mxu0 0
      %1716 = vmatpush1.bf16.msra.mxu0 0
      %1717 = vmatprep.subr.bf16.mxu0 0
      %1718 = vmatpush1.bf16.msra.mxu0 0
      %1719 = vmatprep.subr.bf16.mxu0 0
      %1720 = vmatpush1.bf16.msra.mxu0 0
      %1721 = vmatprep.subr.bf16.mxu0 0
      %1722 = vmatpush1.bf16.msra.mxu0 0
      %1723 = vmatprep.subr.bf16.mxu0 0
      %1724 = vmatpush1.bf16.msra.mxu0 0
      %1725 = vmatprep.subr.bf16.mxu0 0
      %1726 = vmatpush1.bf16.msra.mxu0 0
      %1727 = vmatprep.subr.bf16.mxu0 0
      %1728 = vmatpush1.bf16.msra.mxu0 0
      %1729 = vmatprep.mubr.bf16.mxu0 0
      %1730 = vmatmul.mubr.bf16.gmra.mrb[0].mxu0 %v1625
      %v1731 = vpop.f32.mrb[0].mxu0
      %v1732 = vadd.f32 %v1647, %v1731
      %v1733 = vpop.f32.mrb[0].mxu0
      %v1734 = vpop.f32.mrb[0].mxu0
      %v1735 = vpop.f32.mrb[0].mxu0
      %1736 = vdwg.mxu0
      %1737 = vst [vmem:[#allocation15] sm:$0xff] %v1732
    $region53: #{tpu_custom_call.1} parent=1 // pred_fallthru
      _
    // Predicated region
    $region54: #{tpu_custom_call.1} parent=1 // pred_check
      _
    $region55: #{tpu_custom_call.1} parent=1 // pred_check_branch
      %1739 = sbr.rel (0) target = $region57
    $region56: #{tpu_custom_call.1} parent=1 // pred_region
      %s1741 = ssub.s32 1024, 1024
      %1742 = vsyncadd [#allocation8], %s1741
      %s1743 = sshll.u32 [#allocation14], 4
      %s1744 = int_to_ptr.vmem [resolvable:$true] %s1743
      %1749 = dma.vmem_to_hbm [thread:$0]  %s1744, 1024, %s7, [#allocation8], 128, 128, 8
    $region57: #{tpu_custom_call.1} parent=1 // pred_fallthru
      _
    // Predicated region
    $region58: #{tpu_custom_call.1} parent=1 // pred_check
      _
    $region59: #{tpu_custom_call.1} parent=1 // pred_check_branch
      %1751 = sbr.rel (0) target = $region61
    $region60: #{tpu_custom_call.1} parent=1 // pred_region
      %s1753 = ssub.s32 128, 128
      %1754 = vsyncadd [#allocation16], %s1753
      %s1756 = sshll.u32 [#allocation15], 4
      %s1757 = int_to_ptr.vmem [resolvable:$true] %s1756
      %1759 = dma.vmem_to_hbm [thread:$0]  %s1757, 128, %s8, [#allocation16]
    $region61: #{tpu_custom_call.1} parent=1 // pred_fallthru
      _
    // Predicated region
    $region62: #{tpu_custom_call.1} parent=1 // pred_check
      _
    $region63: #{tpu_custom_call.1} parent=1 // pred_check_branch
      %1761 = sbr.rel (0) target = $region65
    $region64: #{tpu_custom_call.1} parent=1 // pred_region
      %1762 = dma.done [#allocation8], 1024
    $region65: #{tpu_custom_call.1} parent=1 // pred_fallthru
      _
    // Predicated region
    $region66: #{tpu_custom_call.1} parent=1 // pred_check
      _
    $region67: #{tpu_custom_call.1} parent=1 // pred_check_branch
      %1764 = sbr.rel (0) target = $region69
    $region68: #{tpu_custom_call.1} parent=1 // pred_region
      %1765 = dma.done [#allocation16], 128
    $region69: #{tpu_custom_call.1} parent=1 // pred_fallthru
      _
    %1766 = vsyncpa [#allocation7], 1
    %1767 = vsyncpa [#allocation10], 1
    %1768 = vsyncpa [#allocation13], 1
    %1769 = vsyncpa [#allocation8], 1
    %1770 = vsyncpa [#allocation16], 1

</llo_original>
